<compile_context>
chip_gen: v7x
topology: tpu7x:2x2x1
jax: 0.10.0
libtpu: 0.0.40
codegen_flags: <defaults>
</compile_context>

<pallas_src>
import functools

import numpy as np
import jax
import jax.numpy as jnp
from jax.experimental import pallas as pl
from jax.experimental.pallas import tpu as pltpu

EPS = 1e-5     # BatchNorm1d default eps
K = 5          # kernel size used by every AutoEnc layer
LANE = 128     # TPU lane width
SUB = 8        # TPU sublane width


def _round_up(x, m):
    return ((x + m - 1) // m) * m


# ------------------------------ Pallas kernel ------------------------------ #
def _autoenc_fused_kernel(*refs, m_outs, gamma):
    """refs = (x, [w_all_i, s_wide_i, bn_i] * n_layers, out).

    Per layer (all sizes static):
      w_all : (K*Cp, Cin_p) bf16  tap-stacked, channel-padded conv weights
      s_wide: (Min_p, K*Mp) bf16  0/1 tap selectors, one 128-lane block per tap
      bn    : (Cp, 2)       f32   [:,0]=BN weight, [:,1]=BN bias
    """
    x_ref, out_ref = refs[0], refs[-1]
    layer_refs = refs[1:-1]
    n_layers = len(layer_refs) // 3

    act = x_ref[...]                                    # (Cin_p, Min_p) f32, on-chip
    for i in range(n_layers):
        w_ref, s_ref, bn_ref = layer_refs[3 * i: 3 * i + 3]
        kcp, c_in = w_ref.shape
        c_pad = kcp // K
        mp = s_ref.shape[1] // K                        # 128-padded N*L_out
        m_out = m_outs[i]                               # valid (= N*L_out) lanes

        # (1) all-tap weight contraction: ONE MXU pass (K*Cp rows are free <128).
        if c_in == 1:
            z = w_ref[...] * act                        # contraction dim 1 -> VPU outer product
        else:
            z = jnp.dot(w_ref[...], act.astype(jnp.bfloat16),
                        preferred_element_type=jnp.float32)   # (K*Cp, Min_p)

        # (2) all-tap gather: ONE wide matmul against the 0/1 selector slab.
        yw = jnp.dot(z.astype(jnp.bfloat16), s_ref[...],
                     preferred_element_type=jnp.float32)      # (K*Cp, K*Mp)

        # (3) conv output = sum of the K matching (tap, tap) diagonal blocks.
        #     All slices are 8-sublane / 128-lane aligned -> pure vreg selects.
        y = yw[0:c_pad, 0:mp]                           # k = 0 initialises the acc
        for k in range(1, K):
            y = y + yw[k * c_pad:(k + 1) * c_pad, k * mp:(k + 1) * mp]
        # conv bias intentionally omitted: cancelled exactly by the train-mode
        # BatchNorm mean subtraction below.

        # (4) BatchNorm1d (training-mode batch stats) + ReLU, folded affine.
        #     Padded lanes/rows of y are exactly 0, so full-width sums equal the
        #     valid-position sums; divide by the true element count m_out.
        #     TODO(synk): switch to two-pass stats (with lane masking) before
        #     scaling activations up, per the one-pass-cancellation concern.
        inv_m = 1.0 / m_out                             # compile-time constant
        mean = jnp.sum(y, axis=1, keepdims=True) * inv_m
        ex2 = jnp.sum(y * y, axis=1, keepdims=True) * inv_m
        var = jnp.maximum(ex2 - mean * mean, 0.0)       # biased variance
        scale = bn_ref[:, 0:1] * jax.lax.rsqrt(var + EPS)
        shift = bn_ref[:, 1:2] - mean * scale
        act = jnp.maximum(y * scale + shift, 0.0)       # BN affine + ReLU
        # Lanes >= m_out now hold relu(shift) garbage; the next layer's selector
        # has zero rows there, so they never reach a valid output.

    # ---- head: torch.clamp(x, max=1) ** gamma (ReLU already gives x >= 0) ----
    act = jnp.minimum(act, 1.0)
    if gamma != 1.0:                                    # static trace-time branch
        ig = int(round(gamma))
        if abs(gamma - ig) < 1e-12 and 1 < ig <= 8:
            p = act
            for _ in range(ig - 1):                     # integer gamma: VPU only
                p = p * act
            act = p
        else:
            act = jnp.power(act, gamma)                 # fractional gamma: EUP
    out_ref[...] = act[:out_ref.shape[0], :out_ref.shape[1]]


# ------------------------- parameter construction -------------------------- #
def init_autoenc_params(key, parameters):
    """Deterministic synthetic init matching the PyTorch module's layer list.
    Conv biases are omitted: train-mode BatchNorm cancels them exactly."""

    def conv_layer(k, c_in, c_out, padding):
        return dict(type="conv", stride=2, padding=padding, output_padding=0,
                    w=jax.random.uniform(k, (c_out, c_in, K), jnp.float32, -0.3, 0.3),
                    bn_w=jnp.ones((c_out,), jnp.float32),
                    bn_b=jnp.zeros((c_out,), jnp.float32))

    def convT_layer(k, c_in, c_out, padding):
        return dict(type="convT", stride=2, padding=padding, output_padding=1,
                    w=jax.random.uniform(k, (c_in, c_out, K), jnp.float32, -0.3, 0.3),
                    bn_w=jnp.ones((c_out,), jnp.float32),
                    bn_b=jnp.zeros((c_out,), jnp.float32))

    keys = iter(jax.random.split(key, 4 * len(parameters)))
    last_p = parameters[0]
    e_layers = [conv_layer(next(keys), 1, last_p, padding=3)]
    d_layers = [convT_layer(next(keys), last_p, 1, padding=3)]
    for p in parameters[1:]:
        e_layers.append(conv_layer(next(keys), last_p, p, padding=2))
        d_layers.append(convT_layer(next(keys), p, last_p, padding=2))
        last_p = p
    d_layers.reverse()
    return e_layers + d_layers


# -------------------- host-side (trace-time) operand prep ------------------ #
def build_operands(layers, N, L_in):
    """Per layer: (w_all (K*Cp, Cin_p) bf16, s_wide (Min_p, K*Mp) bf16, bn (Cp,2) f32)."""
    ops, m_outs = [], []
    L = L_in
    m_in_phys = N * L_in        # lane width of the activation slab entering the layer
    c_in_phys = 1               # sublane rows of the slab (padded channel count)
    c_final = 1
    for p in layers:
        stride, pad, opad = p["stride"], p["padding"], p["output_padding"]
        conv = (p["type"] == "conv")
        if conv:
            L_out = (L + 2 * pad - K) // stride + 1
            w_t = np.transpose(np.asarray(p["w"], np.float32), (2, 0, 1))  # (K,Cout,Cin)
        else:
            L_out = (L - 1) * stride - 2 * pad + K + opad
            w_t = np.transpose(np.asarray(p["w"], np.float32), (2, 1, 0))  # (K,Cout,Cin)
        _, c_out, c_in = w_t.shape
        c_pad = _round_up(c_out, SUB)
        m_out = N * L_out
        mp = _round_up(m_out, LANE)

        # Tap-stacked, channel-padded weights (zero rows/cols for padding).
        w_all = np.zeros((K * c_pad, c_in_phys), np.float32)
        for k in range(K):
            w_all[k * c_pad: k * c_pad + c_out, :c_in] = w_t[k]

        # Wide 0/1 selector: one 128-padded lane block per tap; rows beyond the
        # valid activation width stay zero (kills inter-layer padding garbage).
        sel = np.zeros((m_in_phys, K * mp), np.float32)
        for k in range(K):
            for n in range(N):
                if conv:        # out[o] reads in[stride*o + k - pad]
                    for o in range(L_out):
                        l = stride * o + k - pad
                        if 0 <= l < L:
                            sel[n * L + l, k * mp + n * L_out + o] = 1.0
                else:           # in[i] scatters to out[stride*i + k - pad]
                    for i in range(L):
                        o = stride * i + k - pad
                        if 0 <= o < L_out:
                            sel[n * L + i, k * mp + n * L_out + o] = 1.0

        # BN params padded to Cp (weight=1, bias=0 on padding rows -> rows stay 0).
        bn = np.zeros((c_pad, 2), np.float32)
        bn[:, 0] = 1.0
        bn[:c_out, 0] = np.asarray(p["bn_w"], np.float32)
        bn[:c_out, 1] = np.asarray(p["bn_b"], np.float32)

        ops.append((jnp.asarray(w_all, jnp.bfloat16),
                    jnp.asarray(sel, jnp.bfloat16),
                    jnp.asarray(bn, jnp.float32)))
        m_outs.append(m_out)
        L, m_in_phys, c_in_phys, c_final = L_out, mp, c_pad, c_out
    return ops, tuple(m_outs), L, c_final


# ------------------------------ forward pass ------------------------------- #
def autoenc_forward(layers, x, gamma=1.0):
    """x: (N, C=1, L) in PyTorch NCL layout. Whole network = one pallas_call."""
    N, c0, L = x.shape
    ops, m_outs, L_final, c_final = build_operands(layers, N, L)

    if c0 == 1:                                   # size-1 channel axis: pure reshape
        x2d = x.reshape(c0, N * L)
    else:
        x2d = jnp.transpose(x, (1, 0, 2)).reshape(c0, N * L)

    flat = [x2d]
    for w_all, s_wide, bn in ops:
        flat.extend((w_all, s_wide, bn))

    vmem = pl.BlockSpec(memory_space=pltpu.MemorySpace.VMEM)
    out2d = pl.pallas_call(
        functools.partial(_autoenc_fused_kernel, m_outs=m_outs, gamma=gamma),
        out_shape=jax.ShapeDtypeStruct((c_final, N * L_final), jnp.float32),
        in_specs=[vmem] * len(flat),
        out_specs=vmem,
    )(*flat)

    if c_final == 1:                              # size-1 channel axis: pure reshape
        return out2d.reshape(N, 1, L_final)
    return jnp.transpose(out2d.reshape(c_final, N, L_final), (1, 0, 2))


# --------------------------------- main ------------------------------------ #
if __name__ == "__main__":
    key = jax.random.PRNGKey(0)
    k_param, k_x = jax.random.split(key)

    parameters = [4, 8]     # AutoEnc([4, 8], gamma=1.0)
    gamma = 1.0
    layers = init_autoenc_params(k_param, parameters)

    # Conv1d input: (N, C=1, L)   (PyTorch NCL, the 1-D analog of NCHW)
    x = jax.random.uniform(k_x, (2, 1, 16), dtype=jnp.float32)

    out = autoenc_forward(layers, x, gamma=gamma)
    out = jax.block_until_ready(out)

    # Length traced through the PyTorch ops: 16 -> 9 -> 5 -> 10 -> 18
    assert out.shape == (2, 1, 18), out.shape
    assert bool(jnp.all(jnp.isfinite(out)))
    assert bool(jnp.all(out <= 1.0 + 1e-6)) and bool(jnp.all(out >= 0.0))
    print("KERNEL_OK")
</pallas_src>

<mosaic_0001>
module attributes {stable_mosaic.version = 11 : i64} {
  func.func @_autoenc_fused_kernel(%arg0: memref<1x32xf32, #tpu.memory_space<vmem>>, %arg1: memref<40x1xbf16, #tpu.memory_space<vmem>>, %arg2: memref<32x640xbf16, #tpu.memory_space<vmem>>, %arg3: memref<8x2xf32, #tpu.memory_space<vmem>>, %arg4: memref<40x8xbf16, #tpu.memory_space<vmem>>, %arg5: memref<128x640xbf16, #tpu.memory_space<vmem>>, %arg6: memref<8x2xf32, #tpu.memory_space<vmem>>, %arg7: memref<40x8xbf16, #tpu.memory_space<vmem>>, %arg8: memref<128x640xbf16, #tpu.memory_space<vmem>>, %arg9: memref<8x2xf32, #tpu.memory_space<vmem>>, %arg10: memref<40x8xbf16, #tpu.memory_space<vmem>>, %arg11: memref<128x640xbf16, #tpu.memory_space<vmem>>, %arg12: memref<8x2xf32, #tpu.memory_space<vmem>>, %arg13: memref<1x36xf32, #tpu.memory_space<vmem>>) attributes {dimension_semantics = [], scalar_prefetch = 0 : i64, scratch_operands = 0 : i64, tpu.core_type = #tpu.core_type<tc>} {
    %c0 = arith.constant 0 : index
    %c0_0 = arith.constant 0 : index
    %0 = vector.load %arg0[%c0, %c0_0] : memref<1x32xf32, #tpu.memory_space<vmem>>, vector<1x32xf32>
    %c0_1 = arith.constant 0 : index
    %c0_2 = arith.constant 0 : index
    %1 = vector.load %arg1[%c0_1, %c0_2] : memref<40x1xbf16, #tpu.memory_space<vmem>>, vector<40x1xbf16>
    %2 = arith.extf %1 : vector<40x1xbf16> to vector<40x1xf32>
    %3 = vector.broadcast %2 : vector<40x1xf32> to vector<40x32xf32>
    %4 = vector.broadcast %0 : vector<1x32xf32> to vector<40x32xf32>
    %5 = arith.mulf %3, %4 : vector<40x32xf32>
    %6 = arith.truncf %5 : vector<40x32xf32> to vector<40x32xbf16>
    %c0_3 = arith.constant 0 : index
    %c0_4 = arith.constant 0 : index
    %7 = vector.load %arg2[%c0_3, %c0_4] : memref<32x640xbf16, #tpu.memory_space<vmem>>, vector<32x640xbf16>
    %cst = arith.constant dense<0.000000e+00> : vector<40x640xf32>
    %8 = tpu.matmul %6, %7, %cst {dimension_numbers = #tpu.dot_dimension_numbers<[1], [0], [0], [1], [0, 0, 1, 1], [], []>} : vector<40x32xbf16>, vector<32x640xbf16>, vector<40x640xf32> -> vector<40x640xf32>
    %9 = vector.extract_strided_slice %8 {offsets = [0, 0], sizes = [8, 128], strides = [1, 1]} : vector<40x640xf32> to vector<8x128xf32>
    %10 = vector.extract_strided_slice %8 {offsets = [8, 128], sizes = [8, 128], strides = [1, 1]} : vector<40x640xf32> to vector<8x128xf32>
    %11 = arith.addf %9, %10 : vector<8x128xf32>
    %12 = vector.extract_strided_slice %8 {offsets = [16, 256], sizes = [8, 128], strides = [1, 1]} : vector<40x640xf32> to vector<8x128xf32>
    %13 = arith.addf %11, %12 : vector<8x128xf32>
    %14 = vector.extract_strided_slice %8 {offsets = [24, 384], sizes = [8, 128], strides = [1, 1]} : vector<40x640xf32> to vector<8x128xf32>
    %15 = arith.addf %13, %14 : vector<8x128xf32>
    %16 = vector.extract_strided_slice %8 {offsets = [32, 512], sizes = [8, 128], strides = [1, 1]} : vector<40x640xf32> to vector<8x128xf32>
    %17 = arith.addf %15, %16 : vector<8x128xf32>
    %cst_5 = arith.constant dense<0.000000e+00> : vector<8xf32>
    %18 = vector.multi_reduction <add>, %17, %cst_5 [1] : vector<8x128xf32> to vector<8xf32>
    %19 = vector.shape_cast %18 : vector<8xf32> to vector<8x1xf32>
    %cst_6 = arith.constant 0.055555556 : f32
    %20 = vector.broadcast %cst_6 : f32 to vector<8x1xf32>
    %21 = arith.mulf %19, %20 : vector<8x1xf32>
    %22 = arith.mulf %17, %17 : vector<8x128xf32>
    %cst_7 = arith.constant dense<0.000000e+00> : vector<8xf32>
    %23 = vector.multi_reduction <add>, %22, %cst_7 [1] : vector<8x128xf32> to vector<8xf32>
    %24 = vector.shape_cast %23 : vector<8xf32> to vector<8x1xf32>
    %cst_8 = arith.constant 0.055555556 : f32
    %25 = vector.broadcast %cst_8 : f32 to vector<8x1xf32>
    %26 = arith.mulf %24, %25 : vector<8x1xf32>
    %27 = arith.mulf %21, %21 : vector<8x1xf32>
    %28 = arith.subf %26, %27 : vector<8x1xf32>
    %cst_9 = arith.constant 0.000000e+00 : f32
    %29 = vector.broadcast %cst_9 : f32 to vector<8x1xf32>
    %30 = arith.maximumf %28, %29 : vector<8x1xf32>
    %c0_10 = arith.constant 0 : index
    %c0_11 = arith.constant 0 : index
    %31 = vector.load %arg3[%c0_10, %c0_11] : memref<8x2xf32, #tpu.memory_space<vmem>>, vector<8x1xf32>
    %cst_12 = arith.constant 9.99999974E-6 : f32
    %32 = vector.broadcast %cst_12 : f32 to vector<8x1xf32>
    %33 = arith.addf %30, %32 : vector<8x1xf32>
    %34 = math.rsqrt %33 : vector<8x1xf32>
    %35 = arith.mulf %31, %34 : vector<8x1xf32>
    %c0_13 = arith.constant 0 : index
    %c1 = arith.constant 1 : index
    %36 = vector.load %arg3[%c0_13, %c1] : memref<8x2xf32, #tpu.memory_space<vmem>>, vector<8x1xf32>
    %37 = arith.mulf %21, %35 : vector<8x1xf32>
    %38 = arith.subf %36, %37 : vector<8x1xf32>
    %39 = vector.broadcast %35 : vector<8x1xf32> to vector<8x128xf32>
    %40 = arith.mulf %17, %39 : vector<8x128xf32>
    %41 = vector.broadcast %38 : vector<8x1xf32> to vector<8x128xf32>
    %42 = arith.addf %40, %41 : vector<8x128xf32>
    %cst_14 = arith.constant 0.000000e+00 : f32
    %43 = vector.broadcast %cst_14 : f32 to vector<8x128xf32>
    %44 = arith.maximumf %42, %43 : vector<8x128xf32>
    %c0_15 = arith.constant 0 : index
    %c0_16 = arith.constant 0 : index
    %45 = vector.load %arg4[%c0_15, %c0_16] : memref<40x8xbf16, #tpu.memory_space<vmem>>, vector<40x8xbf16>
    %46 = arith.truncf %44 : vector<8x128xf32> to vector<8x128xbf16>
    %cst_17 = arith.constant dense<0.000000e+00> : vector<40x128xf32>
    %47 = tpu.matmul %45, %46, %cst_17 {dimension_numbers = #tpu.dot_dimension_numbers<[1], [0], [0], [1], [0, 0, 1, 1], [], []>} : vector<40x8xbf16>, vector<8x128xbf16>, vector<40x128xf32> -> vector<40x128xf32>
    %48 = arith.truncf %47 : vector<40x128xf32> to vector<40x128xbf16>
    %c0_18 = arith.constant 0 : index
    %c0_19 = arith.constant 0 : index
    %49 = vector.load %arg5[%c0_18, %c0_19] : memref<128x640xbf16, #tpu.memory_space<vmem>>, vector<128x640xbf16>
    %cst_20 = arith.constant dense<0.000000e+00> : vector<40x640xf32>
    %50 = tpu.matmul %48, %49, %cst_20 {dimension_numbers = #tpu.dot_dimension_numbers<[1], [0], [0], [1], [0, 0, 1, 1], [], []>} : vector<40x128xbf16>, vector<128x640xbf16>, vector<40x640xf32> -> vector<40x640xf32>
    %51 = vector.extract_strided_slice %50 {offsets = [0, 0], sizes = [8, 128], strides = [1, 1]} : vector<40x640xf32> to vector<8x128xf32>
    %52 = vector.extract_strided_slice %50 {offsets = [8, 128], sizes = [8, 128], strides = [1, 1]} : vector<40x640xf32> to vector<8x128xf32>
    %53 = arith.addf %51, %52 : vector<8x128xf32>
    %54 = vector.extract_strided_slice %50 {offsets = [16, 256], sizes = [8, 128], strides = [1, 1]} : vector<40x640xf32> to vector<8x128xf32>
    %55 = arith.addf %53, %54 : vector<8x128xf32>
    %56 = vector.extract_strided_slice %50 {offsets = [24, 384], sizes = [8, 128], strides = [1, 1]} : vector<40x640xf32> to vector<8x128xf32>
    %57 = arith.addf %55, %56 : vector<8x128xf32>
    %58 = vector.extract_strided_slice %50 {offsets = [32, 512], sizes = [8, 128], strides = [1, 1]} : vector<40x640xf32> to vector<8x128xf32>
    %59 = arith.addf %57, %58 : vector<8x128xf32>
    %cst_21 = arith.constant dense<0.000000e+00> : vector<8xf32>
    %60 = vector.multi_reduction <add>, %59, %cst_21 [1] : vector<8x128xf32> to vector<8xf32>
    %61 = vector.shape_cast %60 : vector<8xf32> to vector<8x1xf32>
    %cst_22 = arith.constant 1.000000e-01 : f32
    %62 = vector.broadcast %cst_22 : f32 to vector<8x1xf32>
    %63 = arith.mulf %61, %62 : vector<8x1xf32>
    %64 = arith.mulf %59, %59 : vector<8x128xf32>
    %cst_23 = arith.constant dense<0.000000e+00> : vector<8xf32>
    %65 = vector.multi_reduction <add>, %64, %cst_23 [1] : vector<8x128xf32> to vector<8xf32>
    %66 = vector.shape_cast %65 : vector<8xf32> to vector<8x1xf32>
    %cst_24 = arith.constant 1.000000e-01 : f32
    %67 = vector.broadcast %cst_24 : f32 to vector<8x1xf32>
    %68 = arith.mulf %66, %67 : vector<8x1xf32>
    %69 = arith.mulf %63, %63 : vector<8x1xf32>
    %70 = arith.subf %68, %69 : vector<8x1xf32>
    %cst_25 = arith.constant 0.000000e+00 : f32
    %71 = vector.broadcast %cst_25 : f32 to vector<8x1xf32>
    %72 = arith.maximumf %70, %71 : vector<8x1xf32>
    %c0_26 = arith.constant 0 : index
    %c0_27 = arith.constant 0 : index
    %73 = vector.load %arg6[%c0_26, %c0_27] : memref<8x2xf32, #tpu.memory_space<vmem>>, vector<8x1xf32>
    %cst_28 = arith.constant 9.99999974E-6 : f32
    %74 = vector.broadcast %cst_28 : f32 to vector<8x1xf32>
    %75 = arith.addf %72, %74 : vector<8x1xf32>
    %76 = math.rsqrt %75 : vector<8x1xf32>
    %77 = arith.mulf %73, %76 : vector<8x1xf32>
    %c0_29 = arith.constant 0 : index
    %c1_30 = arith.constant 1 : index
    %78 = vector.load %arg6[%c0_29, %c1_30] : memref<8x2xf32, #tpu.memory_space<vmem>>, vector<8x1xf32>
    %79 = arith.mulf %63, %77 : vector<8x1xf32>
    %80 = arith.subf %78, %79 : vector<8x1xf32>
    %81 = vector.broadcast %77 : vector<8x1xf32> to vector<8x128xf32>
    %82 = arith.mulf %59, %81 : vector<8x128xf32>
    %83 = vector.broadcast %80 : vector<8x1xf32> to vector<8x128xf32>
    %84 = arith.addf %82, %83 : vector<8x128xf32>
    %cst_31 = arith.constant 0.000000e+00 : f32
    %85 = vector.broadcast %cst_31 : f32 to vector<8x128xf32>
    %86 = arith.maximumf %84, %85 : vector<8x128xf32>
    %c0_32 = arith.constant 0 : index
    %c0_33 = arith.constant 0 : index
    %87 = vector.load %arg7[%c0_32, %c0_33] : memref<40x8xbf16, #tpu.memory_space<vmem>>, vector<40x8xbf16>
    %88 = arith.truncf %86 : vector<8x128xf32> to vector<8x128xbf16>
    %cst_34 = arith.constant dense<0.000000e+00> : vector<40x128xf32>
    %89 = tpu.matmul %87, %88, %cst_34 {dimension_numbers = #tpu.dot_dimension_numbers<[1], [0], [0], [1], [0, 0, 1, 1], [], []>} : vector<40x8xbf16>, vector<8x128xbf16>, vector<40x128xf32> -> vector<40x128xf32>
    %90 = arith.truncf %89 : vector<40x128xf32> to vector<40x128xbf16>
    %c0_35 = arith.constant 0 : index
    %c0_36 = arith.constant 0 : index
    %91 = vector.load %arg8[%c0_35, %c0_36] : memref<128x640xbf16, #tpu.memory_space<vmem>>, vector<128x640xbf16>
    %cst_37 = arith.constant dense<0.000000e+00> : vector<40x640xf32>
    %92 = tpu.matmul %90, %91, %cst_37 {dimension_numbers = #tpu.dot_dimension_numbers<[1], [0], [0], [1], [0, 0, 1, 1], [], []>} : vector<40x128xbf16>, vector<128x640xbf16>, vector<40x640xf32> -> vector<40x640xf32>
    %93 = vector.extract_strided_slice %92 {offsets = [0, 0], sizes = [8, 128], strides = [1, 1]} : vector<40x640xf32> to vector<8x128xf32>
    %94 = vector.extract_strided_slice %92 {offsets = [8, 128], sizes = [8, 128], strides = [1, 1]} : vector<40x640xf32> to vector<8x128xf32>
    %95 = arith.addf %93, %94 : vector<8x128xf32>
    %96 = vector.extract_strided_slice %92 {offsets = [16, 256], sizes = [8, 128], strides = [1, 1]} : vector<40x640xf32> to vector<8x128xf32>
    %97 = arith.addf %95, %96 : vector<8x128xf32>
    %98 = vector.extract_strided_slice %92 {offsets = [24, 384], sizes = [8, 128], strides = [1, 1]} : vector<40x640xf32> to vector<8x128xf32>
    %99 = arith.addf %97, %98 : vector<8x128xf32>
    %100 = vector.extract_strided_slice %92 {offsets = [32, 512], sizes = [8, 128], strides = [1, 1]} : vector<40x640xf32> to vector<8x128xf32>
    %101 = arith.addf %99, %100 : vector<8x128xf32>
    %cst_38 = arith.constant dense<0.000000e+00> : vector<8xf32>
    %102 = vector.multi_reduction <add>, %101, %cst_38 [1] : vector<8x128xf32> to vector<8xf32>
    %103 = vector.shape_cast %102 : vector<8xf32> to vector<8x1xf32>
    %cst_39 = arith.constant 5.000000e-02 : f32
    %104 = vector.broadcast %cst_39 : f32 to vector<8x1xf32>
    %105 = arith.mulf %103, %104 : vector<8x1xf32>
    %106 = arith.mulf %101, %101 : vector<8x128xf32>
    %cst_40 = arith.constant dense<0.000000e+00> : vector<8xf32>
    %107 = vector.multi_reduction <add>, %106, %cst_40 [1] : vector<8x128xf32> to vector<8xf32>
    %108 = vector.shape_cast %107 : vector<8xf32> to vector<8x1xf32>
    %cst_41 = arith.constant 5.000000e-02 : f32
    %109 = vector.broadcast %cst_41 : f32 to vector<8x1xf32>
    %110 = arith.mulf %108, %109 : vector<8x1xf32>
    %111 = arith.mulf %105, %105 : vector<8x1xf32>
    %112 = arith.subf %110, %111 : vector<8x1xf32>
    %cst_42 = arith.constant 0.000000e+00 : f32
    %113 = vector.broadcast %cst_42 : f32 to vector<8x1xf32>
    %114 = arith.maximumf %112, %113 : vector<8x1xf32>
    %c0_43 = arith.constant 0 : index
    %c0_44 = arith.constant 0 : index
    %115 = vector.load %arg9[%c0_43, %c0_44] : memref<8x2xf32, #tpu.memory_space<vmem>>, vector<8x1xf32>
    %cst_45 = arith.constant 9.99999974E-6 : f32
    %116 = vector.broadcast %cst_45 : f32 to vector<8x1xf32>
    %117 = arith.addf %114, %116 : vector<8x1xf32>
    %118 = math.rsqrt %117 : vector<8x1xf32>
    %119 = arith.mulf %115, %118 : vector<8x1xf32>
    %c0_46 = arith.constant 0 : index
    %c1_47 = arith.constant 1 : index
    %120 = vector.load %arg9[%c0_46, %c1_47] : memref<8x2xf32, #tpu.memory_space<vmem>>, vector<8x1xf32>
    %121 = arith.mulf %105, %119 : vector<8x1xf32>
    %122 = arith.subf %120, %121 : vector<8x1xf32>
    %123 = vector.broadcast %119 : vector<8x1xf32> to vector<8x128xf32>
    %124 = arith.mulf %101, %123 : vector<8x128xf32>
    %125 = vector.broadcast %122 : vector<8x1xf32> to vector<8x128xf32>
    %126 = arith.addf %124, %125 : vector<8x128xf32>
    %cst_48 = arith.constant 0.000000e+00 : f32
    %127 = vector.broadcast %cst_48 : f32 to vector<8x128xf32>
    %128 = arith.maximumf %126, %127 : vector<8x128xf32>
    %c0_49 = arith.constant 0 : index
    %c0_50 = arith.constant 0 : index
    %129 = vector.load %arg10[%c0_49, %c0_50] : memref<40x8xbf16, #tpu.memory_space<vmem>>, vector<40x8xbf16>
    %130 = arith.truncf %128 : vector<8x128xf32> to vector<8x128xbf16>
    %cst_51 = arith.constant dense<0.000000e+00> : vector<40x128xf32>
    %131 = tpu.matmul %129, %130, %cst_51 {dimension_numbers = #tpu.dot_dimension_numbers<[1], [0], [0], [1], [0, 0, 1, 1], [], []>} : vector<40x8xbf16>, vector<8x128xbf16>, vector<40x128xf32> -> vector<40x128xf32>
    %132 = arith.truncf %131 : vector<40x128xf32> to vector<40x128xbf16>
    %c0_52 = arith.constant 0 : index
    %c0_53 = arith.constant 0 : index
    %133 = vector.load %arg11[%c0_52, %c0_53] : memref<128x640xbf16, #tpu.memory_space<vmem>>, vector<128x640xbf16>
    %cst_54 = arith.constant dense<0.000000e+00> : vector<40x640xf32>
    %134 = tpu.matmul %132, %133, %cst_54 {dimension_numbers = #tpu.dot_dimension_numbers<[1], [0], [0], [1], [0, 0, 1, 1], [], []>} : vector<40x128xbf16>, vector<128x640xbf16>, vector<40x640xf32> -> vector<40x640xf32>
    %135 = vector.extract_strided_slice %134 {offsets = [0, 0], sizes = [8, 128], strides = [1, 1]} : vector<40x640xf32> to vector<8x128xf32>
    %136 = vector.extract_strided_slice %134 {offsets = [8, 128], sizes = [8, 128], strides = [1, 1]} : vector<40x640xf32> to vector<8x128xf32>
    %137 = arith.addf %135, %136 : vector<8x128xf32>
    %138 = vector.extract_strided_slice %134 {offsets = [16, 256], sizes = [8, 128], strides = [1, 1]} : vector<40x640xf32> to vector<8x128xf32>
    %139 = arith.addf %137, %138 : vector<8x128xf32>
    %140 = vector.extract_strided_slice %134 {offsets = [24, 384], sizes = [8, 128], strides = [1, 1]} : vector<40x640xf32> to vector<8x128xf32>
    %141 = arith.addf %139, %140 : vector<8x128xf32>
    %142 = vector.extract_strided_slice %134 {offsets = [32, 512], sizes = [8, 128], strides = [1, 1]} : vector<40x640xf32> to vector<8x128xf32>
    %143 = arith.addf %141, %142 : vector<8x128xf32>
    %cst_55 = arith.constant dense<0.000000e+00> : vector<8xf32>
    %144 = vector.multi_reduction <add>, %143, %cst_55 [1] : vector<8x128xf32> to vector<8xf32>
    %145 = vector.shape_cast %144 : vector<8xf32> to vector<8x1xf32>
    %cst_56 = arith.constant 0.027777778 : f32
    %146 = vector.broadcast %cst_56 : f32 to vector<8x1xf32>
    %147 = arith.mulf %145, %146 : vector<8x1xf32>
    %148 = arith.mulf %143, %143 : vector<8x128xf32>
    %cst_57 = arith.constant dense<0.000000e+00> : vector<8xf32>
    %149 = vector.multi_reduction <add>, %148, %cst_57 [1] : vector<8x128xf32> to vector<8xf32>
    %150 = vector.shape_cast %149 : vector<8xf32> to vector<8x1xf32>
    %cst_58 = arith.constant 0.027777778 : f32
    %151 = vector.broadcast %cst_58 : f32 to vector<8x1xf32>
    %152 = arith.mulf %150, %151 : vector<8x1xf32>
    %153 = arith.mulf %147, %147 : vector<8x1xf32>
    %154 = arith.subf %152, %153 : vector<8x1xf32>
    %cst_59 = arith.constant 0.000000e+00 : f32
    %155 = vector.broadcast %cst_59 : f32 to vector<8x1xf32>
    %156 = arith.maximumf %154, %155 : vector<8x1xf32>
    %c0_60 = arith.constant 0 : index
    %c0_61 = arith.constant 0 : index
    %157 = vector.load %arg12[%c0_60, %c0_61] : memref<8x2xf32, #tpu.memory_space<vmem>>, vector<8x1xf32>
    %cst_62 = arith.constant 9.99999974E-6 : f32
    %158 = vector.broadcast %cst_62 : f32 to vector<8x1xf32>
    %159 = arith.addf %156, %158 : vector<8x1xf32>
    %160 = math.rsqrt %159 : vector<8x1xf32>
    %161 = arith.mulf %157, %160 : vector<8x1xf32>
    %c0_63 = arith.constant 0 : index
    %c1_64 = arith.constant 1 : index
    %162 = vector.load %arg12[%c0_63, %c1_64] : memref<8x2xf32, #tpu.memory_space<vmem>>, vector<8x1xf32>
    %163 = arith.mulf %147, %161 : vector<8x1xf32>
    %164 = arith.subf %162, %163 : vector<8x1xf32>
    %165 = vector.broadcast %161 : vector<8x1xf32> to vector<8x128xf32>
    %166 = arith.mulf %143, %165 : vector<8x128xf32>
    %167 = vector.broadcast %164 : vector<8x1xf32> to vector<8x128xf32>
    %168 = arith.addf %166, %167 : vector<8x128xf32>
    %cst_65 = arith.constant 0.000000e+00 : f32
    %169 = vector.broadcast %cst_65 : f32 to vector<8x128xf32>
    %170 = arith.maximumf %168, %169 : vector<8x128xf32>
    %cst_66 = arith.constant 1.000000e+00 : f32
    %171 = vector.broadcast %cst_66 : f32 to vector<8x128xf32>
    %172 = arith.minimumf %170, %171 : vector<8x128xf32>
    %173 = vector.extract_strided_slice %172 {offsets = [0, 0], sizes = [1, 36], strides = [1, 1]} : vector<8x128xf32> to vector<1x36xf32>
    %c0_67 = arith.constant 0 : index
    %c0_68 = arith.constant 0 : index
    %174 = vector.load %arg13[%c0_67, %c0_68] : memref<1x36xf32, #tpu.memory_space<vmem>>, vector<1x36xf32>
    tpu.vector_store %arg13[%c0_67, %c0_68], %173 {strides = array<i32>} : memref<1x36xf32, #tpu.memory_space<vmem>>, vector<1x36xf32>,
    return
  }
}

</mosaic_0001>

<llo_original>
// kernel: tpu_custom_call.1
$region0: #{tpu_custom_call.1}
  #allocation0 [shape = 'u32[]', space=smem, size = 0x4, offset = 0x4, fixed_abs, tag = 'smem constant byte address 0x4 - core index']
  #allocation1 [shape = 'u32[144,128]{1,0:T(1,128)}', space=vmem, size = 0x12000, scoped, tag = 'internal scratch']
  %s0 = inlined_call_operand.vmem [shape: f32[1,32], index: 0, kind: input, shape index: {}]
  %s1 = inlined_call_operand.vmem [shape: bf16[40,1], index: 1, kind: input, shape index: {}]
  %s2 = inlined_call_operand.vmem [shape: bf16[32,640], index: 2, kind: input, shape index: {}]
  %s3 = inlined_call_operand.vmem [shape: f32[8,2], index: 3, kind: input, shape index: {}]
  %s4 = inlined_call_operand.vmem [shape: bf16[40,8], index: 4, kind: input, shape index: {}]
  %s5 = inlined_call_operand.hbm [shape: bf16[128,640], index: 5, kind: input, shape index: {}]
  %s6 = inlined_call_operand.vmem [shape: f32[8,2], index: 6, kind: input, shape index: {}]
  %s7 = inlined_call_operand.vmem [shape: bf16[40,8], index: 7, kind: input, shape index: {}]
  %s8 = inlined_call_operand.hbm [shape: bf16[128,640], index: 8, kind: input, shape index: {}]
  %s9 = inlined_call_operand.vmem [shape: f32[8,2], index: 9, kind: input, shape index: {}]
  %s10 = inlined_call_operand.vmem [shape: bf16[40,8], index: 10, kind: input, shape index: {}]
  %s11 = inlined_call_operand.hbm [shape: bf16[128,640], index: 11, kind: input, shape index: {}]
  %s12 = inlined_call_operand.vmem [shape: f32[8,2], index: 12, kind: input, shape index: {}]
  %s13 = inlined_call_operand.hbm [shape: f32[1,36], index: 13, kind: output, shape index: {}]
  %s14 = sld [smem:[#allocation0]]
  $region74: #{tpu_custom_call.1} parent=0
    _
  %s16 = ssub.s32 1, %s14
  %s17 = scalar_select 0, %s16, %s14
  $region1: #{tpu_custom_call.1} parent=0
    #allocation2 [shape = 'u8[163840]{0}', space=vmem, size = 0x28000, scoped, tag = 'input window, operand 5, single buffered']
    #allocation3 [shape = 's32[1]{0}', space=sflag, size = 0x4, scoped, tag = 'scoped memory for tpu_custom_call.1']
    #allocation4 [shape = 's32[1]{0}', space=sflag, size = 0x4, scoped, tag = 'scoped memory for tpu_custom_call.1']
    #allocation5 [shape = 'u8[163840]{0}', space=vmem, size = 0x28000, scoped, tag = 'input window, operand 8, single buffered']
    #allocation6 [shape = 's32[1]{0}', space=sflag, size = 0x4, scoped, tag = 'scoped memory for tpu_custom_call.1']
    #allocation7 [shape = 'u8[163840]{0}', space=vmem, size = 0x28000, scoped, tag = 'input window, operand 11, single buffered']
    #allocation8 [shape = 'u8[512]{0}', space=vmem, size = 0x400, scoped, tag = 'output window, operand 0, single buffered']
    %18 = vsyncpa [#allocation3], 0
    %19 = vsyncpa [#allocation6], 0
    %20 = vsyncpa [#allocation4], 0
    // Predicated region
    $region2: #{tpu_custom_call.1} parent=1 // pred_check
      _
    $region3: #{tpu_custom_call.1} parent=1 // pred_check_branch
      %22 = sbr.rel (0) target = $region5
    $region4: #{tpu_custom_call.1} parent=1 // pred_region
      _
    $region5: #{tpu_custom_call.1} parent=1 // pred_fallthru
      _
    // Predicated region
    $region6: #{tpu_custom_call.1} parent=1 // pred_check
      _
    $region7: #{tpu_custom_call.1} parent=1 // pred_check_branch
      %24 = sbr.rel (0) target = $region9
    $region8: #{tpu_custom_call.1} parent=1 // pred_region
      _
    $region9: #{tpu_custom_call.1} parent=1 // pred_fallthru
      _
    // Predicated region
    $region10: #{tpu_custom_call.1} parent=1 // pred_check
      _
    $region11: #{tpu_custom_call.1} parent=1 // pred_check_branch
      %26 = sbr.rel (0) target = $region13
    $region12: #{tpu_custom_call.1} parent=1 // pred_region
      _
    $region13: #{tpu_custom_call.1} parent=1 // pred_fallthru
      _
    // Predicated region
    $region14: #{tpu_custom_call.1} parent=1 // pred_check
      _
    $region15: #{tpu_custom_call.1} parent=1 // pred_check_branch
      %28 = sbr.rel (0) target = $region17
    $region16: #{tpu_custom_call.1} parent=1 // pred_region
      _
    $region17: #{tpu_custom_call.1} parent=1 // pred_fallthru
      _
    // Predicated region
    $region18: #{tpu_custom_call.1} parent=1 // pred_check
      _
    $region19: #{tpu_custom_call.1} parent=1 // pred_check_branch
      %30 = sbr.rel (0) target = $region21
    $region20: #{tpu_custom_call.1} parent=1 // pred_region
      _
    $region21: #{tpu_custom_call.1} parent=1 // pred_fallthru
      _
    // Predicated region
    $region22: #{tpu_custom_call.1} parent=1 // pred_check
      _
    $region23: #{tpu_custom_call.1} parent=1 // pred_check_branch
      %32 = sbr.rel (0) target = $region25
    $region24: #{tpu_custom_call.1} parent=1 // pred_region
      %s34 = ssub.s32 5120, 5120
      %35 = vsyncadd [#allocation3], %s34
      %s36 = sshll.u32 [#allocation2], 4
      %s37 = int_to_ptr.vmem [resolvable:$true] %s36
      %42 = dma.hbm_to_vmem [thread:$0]  %s5, 5120, %s37, [#allocation3], 320, 320, 20
    $region25: #{tpu_custom_call.1} parent=1 // pred_fallthru
      _
    // Predicated region
    $region26: #{tpu_custom_call.1} parent=1 // pred_check
      _
    $region27: #{tpu_custom_call.1} parent=1 // pred_check_branch
      %44 = sbr.rel (0) target = $region29
    $region28: #{tpu_custom_call.1} parent=1 // pred_region
      _
    $region29: #{tpu_custom_call.1} parent=1 // pred_fallthru
      _
    // Predicated region
    $region30: #{tpu_custom_call.1} parent=1 // pred_check
      _
    $region31: #{tpu_custom_call.1} parent=1 // pred_check_branch
      %46 = sbr.rel (0) target = $region33
    $region32: #{tpu_custom_call.1} parent=1 // pred_region
      _
    $region33: #{tpu_custom_call.1} parent=1 // pred_fallthru
      _
    // Predicated region
    $region34: #{tpu_custom_call.1} parent=1 // pred_check
      _
    $region35: #{tpu_custom_call.1} parent=1 // pred_check_branch
      %48 = sbr.rel (0) target = $region37
    $region36: #{tpu_custom_call.1} parent=1 // pred_region
      %s50 = ssub.s32 5120, 5120
      %51 = vsyncadd [#allocation6], %s50
      %s52 = sshll.u32 [#allocation5], 4
      %s53 = int_to_ptr.vmem [resolvable:$true] %s52
      %58 = dma.hbm_to_vmem [thread:$0]  %s8, 5120, %s53, [#allocation6], 320, 320, 20
    $region37: #{tpu_custom_call.1} parent=1 // pred_fallthru
      _
    // Predicated region
    $region38: #{tpu_custom_call.1} parent=1 // pred_check
      _
    $region39: #{tpu_custom_call.1} parent=1 // pred_check_branch
      %60 = sbr.rel (0) target = $region41
    $region40: #{tpu_custom_call.1} parent=1 // pred_region
      _
    $region41: #{tpu_custom_call.1} parent=1 // pred_fallthru
      _
    // Predicated region
    $region42: #{tpu_custom_call.1} parent=1 // pred_check
      _
    $region43: #{tpu_custom_call.1} parent=1 // pred_check_branch
      %62 = sbr.rel (0) target = $region45
    $region44: #{tpu_custom_call.1} parent=1 // pred_region
      _
    $region45: #{tpu_custom_call.1} parent=1 // pred_fallthru
      _
    // Predicated region
    $region46: #{tpu_custom_call.1} parent=1 // pred_check
      _
    $region47: #{tpu_custom_call.1} parent=1 // pred_check_branch
      %64 = sbr.rel (0) target = $region49
    $region48: #{tpu_custom_call.1} parent=1 // pred_region
      %s66 = ssub.s32 5120, 5120
      %67 = vsyncadd [#allocation6], %s66
      %s68 = sshll.u32 [#allocation7], 4
      %s69 = int_to_ptr.vmem [resolvable:$true] %s68
      %74 = dma.hbm_to_vmem [thread:$0]  %s11, 5120, %s69, [#allocation6], 320, 320, 20
    $region49: #{tpu_custom_call.1} parent=1 // pred_fallthru
      _
    // Predicated region
    $region50: #{tpu_custom_call.1} parent=1 // pred_check
      _
    $region51: #{tpu_custom_call.1} parent=1 // pred_check_branch
      %76 = sbr.rel (0) target = $region53
    $region52: #{tpu_custom_call.1} parent=1 // pred_region
      _
    $region53: #{tpu_custom_call.1} parent=1 // pred_fallthru
      _
    // Predicated region
    $region54: #{tpu_custom_call.1} parent=1 // pred_check
      _
    $region55: #{tpu_custom_call.1} parent=1 // pred_check_branch
      %78 = sbr.rel (0) target = $region57
    $region56: #{tpu_custom_call.1} parent=1 // pred_region
      %79 = dma.done [#allocation3], 5120
    $region57: #{tpu_custom_call.1} parent=1 // pred_fallthru
      _
    // Predicated region
    $region58: #{tpu_custom_call.1} parent=1 // pred_check
      _
    $region59: #{tpu_custom_call.1} parent=1 // pred_check_branch
      %81 = sbr.rel (0) target = $region61
    $region60: #{tpu_custom_call.1} parent=1 // pred_region
      %82 = dma.done [#allocation6], 5120
    $region61: #{tpu_custom_call.1} parent=1 // pred_fallthru
      _
    // Predicated region
    $region62: #{tpu_custom_call.1} parent=1 // pred_check
      _
    $region63: #{tpu_custom_call.1} parent=1 // pred_check_branch
      %84 = sbr.rel (0) target = $region65
    $region64: #{tpu_custom_call.1} parent=1 // pred_region
      %85 = dma.done [#allocation6], 5120
    $region65: #{tpu_custom_call.1} parent=1 // pred_fallthru
      _
    %v87 = vld [vmem:[%s0] sm:$0x1]
    %v88 = vld [vmem:[%s1] sm:$0xf]
    %v89 = vld [vmem:[%s1 + $0x4] sm:$0xf]
    %v90 = vld [vmem:[%s1 + $0x8] sm:$0xf]
    %v91 = vld [vmem:[%s1 + $0xc] sm:$0xf]
    %v92 = vld [vmem:[%s1 + $0x10] sm:$0xf]
    %v93 = vunpack.c.l.bf16 %v88
    %v94 = vunpack.c.l.bf16 %v89
    %v95 = vunpack.c.l.bf16 %v90
    %v96 = vunpack.c.l.bf16 %v91
    %v97 = vunpack.c.l.bf16 %v92
    %99 = vset.pattern.permute.xlu0 0
    %100 = vperm.xlu0 %99, %v93
    %v101 = vpop.permute.xlu0 %100
    %104 = vset.pattern.permute.xlu0 0
    %105 = vperm.xlu0 %104, %v94
    %v106 = vpop.permute.xlu0 %105
    %109 = vset.pattern.permute.xlu0 0
    %110 = vperm.xlu0 %109, %v95
    %v111 = vpop.permute.xlu0 %110
    %114 = vset.pattern.permute.xlu0 0
    %115 = vperm.xlu0 %114, %v96
    %v116 = vpop.permute.xlu0 %115
    %119 = vset.pattern.permute.xlu0 0
    %120 = vperm.xlu0 %119, %v97
    %v121 = vpop.permute.xlu0 %120
    %v124 = vlaneseq
    %v125 = vshrl.u32 %v124, 7
    %v126 = vsub.s32 0, %v125
    %v127 = vrot.slane %v87, %v126
    %v129 = vmul.f32 %v101, %v127
    %v130 = vmul.f32 %v106, %v127
    %v131 = vmul.f32 %v111, %v127
    %v132 = vmul.f32 %v116, %v127
    %v133 = vmul.f32 %v121, %v127
    %v134 = vpack.c.bf16 %v130, %v129
    %v135 = vpack.c.bf16 %v132, %v131
    %v136 = vpack.c.bf16 %v133, %v133
    %v137 = vld [vmem:[%s2] sm:$0xff]
    %v138 = vld [vmem:[%s2 + $0x8] sm:$0xff]
    %v139 = vld [vmem:[%s2 + $0x10] sm:$0xf]
    %v140 = vld [vmem:[%s2 + $0x14] sm:$0xff]
    %v141 = vld [vmem:[%s2 + $0x1c] sm:$0xff]
    %v142 = vld [vmem:[%s2 + $0x24] sm:$0xf]
    %v143 = vld [vmem:[%s2 + $0x28] sm:$0xff]
    %v144 = vld [vmem:[%s2 + $0x30] sm:$0xff]
    %v145 = vld [vmem:[%s2 + $0x38] sm:$0xf]
    %v146 = vld [vmem:[%s2 + $0x3c] sm:$0xff]
    %v147 = vld [vmem:[%s2 + $0x44] sm:$0xff]
    %v148 = vld [vmem:[%s2 + $0x4c] sm:$0xf]
    %v161 = vunpack.c.l.b16 %v137
    %v162 = vunpack.c.h.b16 %v137
    %v163 = vunpack.c.l.b16 %v138
    %v164 = vunpack.c.h.b16 %v138
    %v165 = vunpack.c.l.b16 %v139
    %v166 = vunpack.c.l.b16 %v140
    %v167 = vunpack.c.h.b16 %v140
    %v168 = vunpack.c.l.b16 %v141
    %v169 = vunpack.c.h.b16 %v141
    %v170 = vunpack.c.l.b16 %v142
    %v171 = vunpack.c.l.b16 %v143
    %v172 = vunpack.c.h.b16 %v143
    %v173 = vunpack.c.l.b16 %v144
    %v174 = vunpack.c.h.b16 %v144
    %v175 = vunpack.c.l.b16 %v145
    %v176 = vunpack.c.l.b16 %v146
    %v177 = vunpack.c.h.b16 %v146
    %v178 = vunpack.c.l.b16 %v147
    %v179 = vunpack.c.h.b16 %v147
    %v180 = vunpack.c.l.b16 %v148
    %v181 = vpack.c.b16 %v166, %v161
    %v182 = vpack.c.b16 %v167, %v162
    %v183 = vpack.c.b16 %v168, %v163
    %v184 = vpack.c.b16 %v169, %v164
    %v185 = vpack.c.b16 %v170, %v165
    %v186 = vpack.c.b16 %v176, %v171
    %v187 = vpack.c.b16 %v177, %v172
    %v188 = vpack.c.b16 %v178, %v173
    %v189 = vpack.c.b16 %v179, %v174
    %v190 = vpack.c.b16 %v180, %v175
    %vm201 = vcmask 261120
    %v203 = vsel %vm201, %v134, 0
    %v206 = vsel %vm201, %v135, 0
    %v209 = vsel %vm201, %v136, 0
    %211 = vmatprep.subr.bf16.mxu0 %v182
    %212 = vmatpush1.bf16.msra.mxu0 %v181
    %213 = vmatprep.subr.bf16.mxu0 %v187
    %214 = vmatpush1.bf16.msra.mxu0 %v186
    %215 = vmatprep.subr.bf16.mxu0 0
    %216 = vmatpush1.bf16.msra.mxu0 0
    %217 = vmatprep.subr.bf16.mxu0 0
    %218 = vmatpush1.bf16.msra.mxu0 0
    %219 = vmatprep.subr.bf16.mxu0 0
    %220 = vmatpush1.bf16.msra.mxu0 0
    %221 = vmatprep.subr.bf16.mxu0 0
    %222 = vmatpush1.bf16.msra.mxu0 0
    %223 = vmatprep.subr.bf16.mxu0 0
    %224 = vmatpush1.bf16.msra.mxu0 0
    %225 = vmatprep.subr.bf16.mxu0 0
    %226 = vmatpush1.bf16.msra.mxu0 0
    %227 = vmatprep.subr.bf16.mxu0 0
    %228 = vmatpush1.bf16.msra.mxu0 0
    %229 = vmatprep.subr.bf16.mxu0 0
    %230 = vmatpush1.bf16.msra.mxu0 0
    %231 = vmatprep.subr.bf16.mxu0 0
    %232 = vmatpush1.bf16.msra.mxu0 0
    %233 = vmatprep.subr.bf16.mxu0 0
    %234 = vmatpush1.bf16.msra.mxu0 0
    %235 = vmatprep.subr.bf16.mxu0 0
    %236 = vmatpush1.bf16.msra.mxu0 0
    %237 = vmatprep.subr.bf16.mxu0 0
    %238 = vmatpush1.bf16.msra.mxu0 0
    %239 = vmatprep.subr.bf16.mxu0 0
    %240 = vmatpush1.bf16.msra.mxu0 0
    %241 = vmatprep.subr.bf16.mxu0 0
    %242 = vmatpush1.bf16.msra.mxu0 0
    %243 = vmatprep.mubr.bf16.mxu0 0
    %244 = vmatmul.mubr.bf16.gmra.mrb[0].mxu0 %v203
    %v245 = vpop.f32.mrb[0].mxu0
    %v246 = vadd.f32 0.0, %v245
    %v247 = vpop.f32.mrb[0].mxu0
    %v248 = vpop.f32.mrb[0].mxu0
    %v249 = vpop.f32.mrb[0].mxu0
    %v250 = vadd.f32 0.0, %v249
    %251 = vmatprep.mubr.bf16.mxu0 0
    %252 = vmatmul.mubr.bf16.gmra.mrb[0].mxu0 %v206
    %v253 = vpop.f32.mrb[0].mxu0
    %v254 = vpop.f32.mrb[0].mxu0
    %v255 = vpop.f32.mrb[0].mxu0
    %v256 = vpop.f32.mrb[0].mxu0
    %257 = vmatprep.mubr.bf16.mxu0 0
    %258 = vmatmul.mubr.bf16.gmra.mrb[0].mxu0 %v209
    %v259 = vpop.f32.mrb[0].mxu0
    %v260 = vpop.f32.mrb[0].mxu0
    %v261 = vpop.f32.mrb[0].mxu0
    %v262 = vpop.f32.mrb[0].mxu0
    %263 = vdwg.mxu0
    %264 = vmatprep.subr.bf16.mxu0 %v184
    %265 = vmatpush1.bf16.msra.mxu0 %v183
    %266 = vmatprep.subr.bf16.mxu0 %v189
    %267 = vmatpush1.bf16.msra.mxu0 %v188
    %268 = vmatprep.subr.bf16.mxu0 0
    %269 = vmatpush1.bf16.msra.mxu0 0
    %270 = vmatprep.subr.bf16.mxu0 0
    %271 = vmatpush1.bf16.msra.mxu0 0
    %272 = vmatprep.subr.bf16.mxu0 0
    %273 = vmatpush1.bf16.msra.mxu0 0
    %274 = vmatprep.subr.bf16.mxu0 0
    %275 = vmatpush1.bf16.msra.mxu0 0
    %276 = vmatprep.subr.bf16.mxu0 0
    %277 = vmatpush1.bf16.msra.mxu0 0
    %278 = vmatprep.subr.bf16.mxu0 0
    %279 = vmatpush1.bf16.msra.mxu0 0
    %280 = vmatprep.subr.bf16.mxu0 0
    %281 = vmatpush1.bf16.msra.mxu0 0
    %282 = vmatprep.subr.bf16.mxu0 0
    %283 = vmatpush1.bf16.msra.mxu0 0
    %284 = vmatprep.subr.bf16.mxu0 0
    %285 = vmatpush1.bf16.msra.mxu0 0
    %286 = vmatprep.subr.bf16.mxu0 0
    %287 = vmatpush1.bf16.msra.mxu0 0
    %288 = vmatprep.subr.bf16.mxu0 0
    %289 = vmatpush1.bf16.msra.mxu0 0
    %290 = vmatprep.subr.bf16.mxu0 0
    %291 = vmatpush1.bf16.msra.mxu0 0
    %292 = vmatprep.subr.bf16.mxu0 0
    %293 = vmatpush1.bf16.msra.mxu0 0
    %294 = vmatprep.subr.bf16.mxu0 0
    %295 = vmatpush1.bf16.msra.mxu0 0
    %296 = vmatprep.mubr.bf16.mxu0 0
    %297 = vmatmul.mubr.bf16.gmra.mrb[0].mxu0 %v203
    %v298 = vpop.f32.mrb[0].mxu0
    %v299 = vpop.f32.mrb[0].mxu0
    %v300 = vpop.f32.mrb[0].mxu0
    %v301 = vpop.f32.mrb[0].mxu0
    %302 = vmatprep.mubr.bf16.mxu0 0
    %303 = vmatmul.mubr.bf16.gmra.mrb[0].mxu0 %v206
    %v304 = vpop.f32.mrb[0].mxu0
    %v305 = vadd.f32 0.0, %v304
    %v306 = vpop.f32.mrb[0].mxu0
    %v307 = vpop.f32.mrb[0].mxu0
    %v308 = vpop.f32.mrb[0].mxu0
    %v309 = vadd.f32 0.0, %v308
    %310 = vmatprep.mubr.bf16.mxu0 0
    %311 = vmatmul.mubr.bf16.gmra.mrb[0].mxu0 %v209
    %v312 = vpop.f32.mrb[0].mxu0
    %v313 = vpop.f32.mrb[0].mxu0
    %v314 = vpop.f32.mrb[0].mxu0
    %v315 = vpop.f32.mrb[0].mxu0
    %316 = vdwg.mxu0
    %317 = vmatprep.subr.bf16.mxu0 0
    %318 = vmatpush1.bf16.msra.mxu0 %v185
    %319 = vmatprep.subr.bf16.mxu0 0
    %320 = vmatpush1.bf16.msra.mxu0 %v190
    %321 = vmatprep.subr.bf16.mxu0 0
    %322 = vmatpush1.bf16.msra.mxu0 0
    %323 = vmatprep.subr.bf16.mxu0 0
    %324 = vmatpush1.bf16.msra.mxu0 0
    %325 = vmatprep.subr.bf16.mxu0 0
    %326 = vmatpush1.bf16.msra.mxu0 0
    %327 = vmatprep.subr.bf16.mxu0 0
    %328 = vmatpush1.bf16.msra.mxu0 0
    %329 = vmatprep.subr.bf16.mxu0 0
    %330 = vmatpush1.bf16.msra.mxu0 0
    %331 = vmatprep.subr.bf16.mxu0 0
    %332 = vmatpush1.bf16.msra.mxu0 0
    %333 = vmatprep.subr.bf16.mxu0 0
    %334 = vmatpush1.bf16.msra.mxu0 0
    %335 = vmatprep.subr.bf16.mxu0 0
    %336 = vmatpush1.bf16.msra.mxu0 0
    %337 = vmatprep.subr.bf16.mxu0 0
    %338 = vmatpush1.bf16.msra.mxu0 0
    %339 = vmatprep.subr.bf16.mxu0 0
    %340 = vmatpush1.bf16.msra.mxu0 0
    %341 = vmatprep.subr.bf16.mxu0 0
    %342 = vmatpush1.bf16.msra.mxu0 0
    %343 = vmatprep.subr.bf16.mxu0 0
    %344 = vmatpush1.bf16.msra.mxu0 0
    %345 = vmatprep.subr.bf16.mxu0 0
    %346 = vmatpush1.bf16.msra.mxu0 0
    %347 = vmatprep.subr.bf16.mxu0 0
    %348 = vmatpush1.bf16.msra.mxu0 0
    %349 = vmatprep.mubr.bf16.mxu0 0
    %350 = vmatmul.mubr.bf16.gmra.mrb[0].mxu0 %v203
    %v351 = vpop.f32.mrb[0].mxu0
    %v352 = vpop.f32.mrb[0].mxu0
    %v353 = vpop.f32.mrb[0].mxu0
    %v354 = vpop.f32.mrb[0].mxu0
    %355 = vmatprep.mubr.bf16.mxu0 0
    %356 = vmatmul.mubr.bf16.gmra.mrb[0].mxu0 %v206
    %v357 = vpop.f32.mrb[0].mxu0
    %v358 = vpop.f32.mrb[0].mxu0
    %v359 = vpop.f32.mrb[0].mxu0
    %v360 = vpop.f32.mrb[0].mxu0
    %361 = vmatprep.mubr.bf16.mxu0 0
    %362 = vmatmul.mubr.bf16.gmra.mrb[0].mxu0 %v209
    %v363 = vpop.f32.mrb[0].mxu0
    %v364 = vadd.f32 0.0, %v363
    %v365 = vpop.f32.mrb[0].mxu0
    %v366 = vpop.f32.mrb[0].mxu0
    %v367 = vpop.f32.mrb[0].mxu0
    %368 = vdwg.mxu0
    %v369 = vadd.f32 %v246, %v250
    %v370 = vadd.f32 %v369, %v305
    %v371 = vadd.f32 %v370, %v309
    %v372 = vadd.f32 %v371, %v364
    %373 = vadd.xlane.f32.xlu0 %v372
    %v374 = vpop.xlane.xlu0 %373
    %v375 = vmul.f32 %v374, 0.055555556
    %v376 = vmul.f32 %v372, %v372
    %377 = vadd.xlane.f32.xlu0 %v376
    %v378 = vpop.xlane.xlu0 %377
    %v379 = vmul.f32 %v378, 0.055555556
    %v380 = vmul.f32 %v375, %v375
    %v381 = vsub.f32 %v379, %v380
    %v382 = vmax.f32 %v381, 0.0
    %v383 = vld [vmem:[%s3] sm:$0xff]
    %v384 = vadd.f32 %v382, 1e-05
    %v385 = vrsqrt.pop %v384
    %v386 = vmul.f32 %v383, %v385
    %v387 = vmul.f32 %v375, %v386
    %389 = vrot.lane.b32.xlu0 %v387, 1
    %v390 = vpop.permute.xlu0 %389
    %v392 = vsub.f32 %v383, %v390
    %394 = vset.pattern.permute.xlu0 0
    %395 = vperm.xlu0 %394, %v386
    %v396 = vpop.permute.xlu0 %395
    %v398 = vmul.f32 %v372, %v396
    %400 = vset.pattern.permute.xlu0 1
    %401 = vperm.xlu0 %400, %v392
    %v402 = vpop.permute.xlu0 %401
    %v404 = vadd.f32 %v398, %v402
    %v405 = vmax.f32 %v404, 0.0
    %v406 = vld [vmem:[%s4] sm:$0xf]
    %v407 = vld [vmem:[%s4 + $0x4] sm:$0xf]
    %v408 = vld [vmem:[%s4 + $0x8] sm:$0xf]
    %v409 = vld [vmem:[%s4 + $0xc] sm:$0xf]
    %v410 = vld [vmem:[%s4 + $0x10] sm:$0xf]
    %v411 = vpack.c.bf16 %v405, %v405
    %v417 = vunpack.c.l.b16 %v406
    %v418 = vunpack.c.l.b16 %v407
    %v419 = vunpack.c.l.b16 %v408
    %v420 = vunpack.c.l.b16 %v409
    %v421 = vunpack.c.l.b16 %v410
    %v422 = vpack.c.b16 %v418, %v417
    %v423 = vpack.c.b16 %v420, %v419
    %v424 = vpack.c.b16 %v421, %v421
    %vm425 = vcmask 64512
    %v427 = vsel %vm425, %v422, 0
    %v430 = vsel %vm425, %v423, 0
    %v433 = vsel %vm425, %v424, 0
    %vm435 = vcmask 1043456
    %v437 = vsel %vm435, %v411, 0
    %439 = vmatprep.subr.bf16.mxu0 0
    %440 = vmatpush1.bf16.msra.mxu0 %v437
    %441 = vmatprep.subr.bf16.mxu0 0
    %442 = vmatpush1.bf16.msra.mxu0 0
    %443 = vmatprep.subr.bf16.mxu0 0
    %444 = vmatpush1.bf16.msra.mxu0 0
    %445 = vmatprep.subr.bf16.mxu0 0
    %446 = vmatpush1.bf16.msra.mxu0 0
    %447 = vmatprep.subr.bf16.mxu0 0
    %448 = vmatpush1.bf16.msra.mxu0 0
    %449 = vmatprep.subr.bf16.mxu0 0
    %450 = vmatpush1.bf16.msra.mxu0 0
    %451 = vmatprep.subr.bf16.mxu0 0
    %452 = vmatpush1.bf16.msra.mxu0 0
    %453 = vmatprep.subr.bf16.mxu0 0
    %454 = vmatpush1.bf16.msra.mxu0 0
    %455 = vmatprep.subr.bf16.mxu0 0
    %456 = vmatpush1.bf16.msra.mxu0 0
    %457 = vmatprep.subr.bf16.mxu0 0
    %458 = vmatpush1.bf16.msra.mxu0 0
    %459 = vmatprep.subr.bf16.mxu0 0
    %460 = vmatpush1.bf16.msra.mxu0 0
    %461 = vmatprep.subr.bf16.mxu0 0
    %462 = vmatpush1.bf16.msra.mxu0 0
    %463 = vmatprep.subr.bf16.mxu0 0
    %464 = vmatpush1.bf16.msra.mxu0 0
    %465 = vmatprep.subr.bf16.mxu0 0
    %466 = vmatpush1.bf16.msra.mxu0 0
    %467 = vmatprep.subr.bf16.mxu0 0
    %468 = vmatpush1.bf16.msra.mxu0 0
    %469 = vmatprep.subr.bf16.mxu0 0
    %470 = vmatpush1.bf16.msra.mxu0 0
    %471 = vmatprep.mubr.bf16.mxu0 0
    %472 = vmatmul.mubr.bf16.gmra.mrb[0].mxu0 %v427
    %v473 = vpop.f32.mrb[0].mxu0
    %v474 = vadd.f32 0.0, %v473
    %v475 = vpop.f32.mrb[0].mxu0
    %v476 = vpop.f32.mrb[0].mxu0
    %v477 = vadd.f32 0.0, %v476
    %v478 = vpop.f32.mrb[0].mxu0
    %479 = vmatprep.mubr.bf16.mxu0 0
    %480 = vmatmul.mubr.bf16.gmra.mrb[0].mxu0 %v430
    %v481 = vpop.f32.mrb[0].mxu0
    %v482 = vadd.f32 0.0, %v481
    %v483 = vpop.f32.mrb[0].mxu0
    %v484 = vpop.f32.mrb[0].mxu0
    %v485 = vadd.f32 0.0, %v484
    %v486 = vpop.f32.mrb[0].mxu0
    %487 = vmatprep.mubr.bf16.mxu0 0
    %488 = vmatmul.mubr.bf16.gmra.mrb[0].mxu0 %v433
    %v489 = vpop.f32.mrb[0].mxu0
    %v490 = vadd.f32 0.0, %v489
    %v491 = vpop.f32.mrb[0].mxu0
    %v492 = vpop.f32.mrb[0].mxu0
    %v493 = vpop.f32.mrb[0].mxu0
    %494 = vdwg.mxu0
    %v495 = vpack.c.bf16 %v477, %v474
    %v496 = vpack.c.bf16 %v485, %v482
    %v497 = vpack.c.bf16 %v490, %v490
    %v498 = vld [vmem:[#allocation2] sm:$0xff]
    %v499 = vld [vmem:[#allocation2 + $0x8] sm:$0xff]
    %v500 = vld [vmem:[#allocation2 + $0x10] sm:$0xf]
    %v501 = vld [vmem:[#allocation2 + $0x14] sm:$0xff]
    %v502 = vld [vmem:[#allocation2 + $0x1c] sm:$0xff]
    %v503 = vld [vmem:[#allocation2 + $0x24] sm:$0xf]
    %v504 = vld [vmem:[#allocation2 + $0x28] sm:$0xff]
    %v505 = vld [vmem:[#allocation2 + $0x30] sm:$0xff]
    %v506 = vld [vmem:[#allocation2 + $0x38] sm:$0xf]
    %v507 = vld [vmem:[#allocation2 + $0x3c] sm:$0xff]
    %v508 = vld [vmem:[#allocation2 + $0x44] sm:$0xff]
    %v509 = vld [vmem:[#allocation2 + $0x4c] sm:$0xf]
    %v510 = vld [vmem:[#allocation2 + $0x50] sm:$0xff]
    %v511 = vld [vmem:[#allocation2 + $0x58] sm:$0xff]
    %v512 = vld [vmem:[#allocation2 + $0x60] sm:$0xf]
    %v513 = vld [vmem:[#allocation2 + $0x64] sm:$0xff]
    %v514 = vld [vmem:[#allocation2 + $0x6c] sm:$0xff]
    %v515 = vld [vmem:[#allocation2 + $0x74] sm:$0xf]
    %v516 = vld [vmem:[#allocation2 + $0x78] sm:$0xff]
    %v517 = vld [vmem:[#allocation2 + $0x80] sm:$0xff]
    %v518 = vld [vmem:[#allocation2 + $0x88] sm:$0xf]
    %v519 = vld [vmem:[#allocation2 + $0x8c] sm:$0xff]
    %v520 = vld [vmem:[#allocation2 + $0x94] sm:$0xff]
    %v521 = vld [vmem:[#allocation2 + $0x9c] sm:$0xf]
    %v522 = vld [vmem:[#allocation2 + $0xa0] sm:$0xff]
    %v523 = vld [vmem:[#allocation2 + $0xa8] sm:$0xff]
    %v524 = vld [vmem:[#allocation2 + $0xb0] sm:$0xf]
    %v525 = vld [vmem:[#allocation2 + $0xb4] sm:$0xff]
    %v526 = vld [vmem:[#allocation2 + $0xbc] sm:$0xff]
    %v527 = vld [vmem:[#allocation2 + $0xc4] sm:$0xf]
    %v528 = vld [vmem:[#allocation2 + $0xc8] sm:$0xff]
    %v529 = vld [vmem:[#allocation2 + $0xd0] sm:$0xff]
    %v530 = vld [vmem:[#allocation2 + $0xd8] sm:$0xf]
    %v531 = vld [vmem:[#allocation2 + $0xdc] sm:$0xff]
    %v532 = vld [vmem:[#allocation2 + $0xe4] sm:$0xff]
    %v533 = vld [vmem:[#allocation2 + $0xec] sm:$0xf]
    %v534 = vld [vmem:[#allocation2 + $0xf0] sm:$0xff]
    %v535 = vld [vmem:[#allocation2 + $0xf8] sm:$0xff]
    %v536 = vld [vmem:[#allocation2 + $0x100] sm:$0xf]
    %v537 = vld [vmem:[#allocation2 + $0x104] sm:$0xff]
    %v538 = vld [vmem:[#allocation2 + $0x10c] sm:$0xff]
    %v539 = vld [vmem:[#allocation2 + $0x114] sm:$0xf]
    %v540 = vld [vmem:[#allocation2 + $0x118] sm:$0xff]
    %v541 = vld [vmem:[#allocation2 + $0x120] sm:$0xff]
    %v542 = vld [vmem:[#allocation2 + $0x128] sm:$0xf]
    %v543 = vld [vmem:[#allocation2 + $0x12c] sm:$0xff]
    %v544 = vld [vmem:[#allocation2 + $0x134] sm:$0xff]
    %v545 = vld [vmem:[#allocation2 + $0x13c] sm:$0xf]
    %v594 = vunpack.c.l.b16 %v498
    %v595 = vunpack.c.h.b16 %v498
    %v596 = vunpack.c.l.b16 %v499
    %v597 = vunpack.c.h.b16 %v499
    %v598 = vunpack.c.l.b16 %v500
    %v599 = vunpack.c.l.b16 %v501
    %v600 = vunpack.c.h.b16 %v501
    %v601 = vunpack.c.l.b16 %v502
    %v602 = vunpack.c.h.b16 %v502
    %v603 = vunpack.c.l.b16 %v503
    %v604 = vunpack.c.l.b16 %v504
    %v605 = vunpack.c.h.b16 %v504
    %v606 = vunpack.c.l.b16 %v505
    %v607 = vunpack.c.h.b16 %v505
    %v608 = vunpack.c.l.b16 %v506
    %v609 = vunpack.c.l.b16 %v507
    %v610 = vunpack.c.h.b16 %v507
    %v611 = vunpack.c.l.b16 %v508
    %v612 = vunpack.c.h.b16 %v508
    %v613 = vunpack.c.l.b16 %v509
    %v614 = vunpack.c.l.b16 %v510
    %v615 = vunpack.c.h.b16 %v510
    %v616 = vunpack.c.l.b16 %v511
    %v617 = vunpack.c.h.b16 %v511
    %v618 = vunpack.c.l.b16 %v512
    %v619 = vunpack.c.l.b16 %v513
    %v620 = vunpack.c.h.b16 %v513
    %v621 = vunpack.c.l.b16 %v514
    %v622 = vunpack.c.h.b16 %v514
    %v623 = vunpack.c.l.b16 %v515
    %v624 = vunpack.c.l.b16 %v516
    %v625 = vunpack.c.h.b16 %v516
    %v626 = vunpack.c.l.b16 %v517
    %v627 = vunpack.c.h.b16 %v517
    %v628 = vunpack.c.l.b16 %v518
    %v629 = vunpack.c.l.b16 %v519
    %v630 = vunpack.c.h.b16 %v519
    %v631 = vunpack.c.l.b16 %v520
    %v632 = vunpack.c.h.b16 %v520
    %v633 = vunpack.c.l.b16 %v521
    %v634 = vunpack.c.l.b16 %v522
    %v635 = vunpack.c.h.b16 %v522
    %v636 = vunpack.c.l.b16 %v523
    %v637 = vunpack.c.h.b16 %v523
    %v638 = vunpack.c.l.b16 %v524
    %v639 = vunpack.c.l.b16 %v525
    %v640 = vunpack.c.h.b16 %v525
    %v641 = vunpack.c.l.b16 %v526
    %v642 = vunpack.c.h.b16 %v526
    %v643 = vunpack.c.l.b16 %v527
    %v644 = vunpack.c.l.b16 %v528
    %v645 = vunpack.c.h.b16 %v528
    %v646 = vunpack.c.l.b16 %v529
    %v647 = vunpack.c.h.b16 %v529
    %v648 = vunpack.c.l.b16 %v530
    %v649 = vunpack.c.l.b16 %v531
    %v650 = vunpack.c.h.b16 %v531
    %v651 = vunpack.c.l.b16 %v532
    %v652 = vunpack.c.h.b16 %v532
    %v653 = vunpack.c.l.b16 %v533
    %v654 = vunpack.c.l.b16 %v534
    %v655 = vunpack.c.h.b16 %v534
    %v656 = vunpack.c.l.b16 %v535
    %v657 = vunpack.c.h.b16 %v535
    %v658 = vunpack.c.l.b16 %v536
    %v659 = vunpack.c.l.b16 %v537
    %v660 = vunpack.c.h.b16 %v537
    %v661 = vunpack.c.l.b16 %v538
    %v662 = vunpack.c.h.b16 %v538
    %v663 = vunpack.c.l.b16 %v539
    %v664 = vunpack.c.l.b16 %v540
    %v665 = vunpack.c.h.b16 %v540
    %v666 = vunpack.c.l.b16 %v541
    %v667 = vunpack.c.h.b16 %v541
    %v668 = vunpack.c.l.b16 %v542
    %v669 = vunpack.c.l.b16 %v543
    %v670 = vunpack.c.h.b16 %v543
    %v671 = vunpack.c.l.b16 %v544
    %v672 = vunpack.c.h.b16 %v544
    %v673 = vunpack.c.l.b16 %v545
    %v674 = vpack.c.b16 %v599, %v594
    %v675 = vpack.c.b16 %v600, %v595
    %v676 = vpack.c.b16 %v601, %v596
    %v677 = vpack.c.b16 %v602, %v597
    %v678 = vpack.c.b16 %v603, %v598
    %v679 = vpack.c.b16 %v609, %v604
    %v680 = vpack.c.b16 %v610, %v605
    %v681 = vpack.c.b16 %v611, %v606
    %v682 = vpack.c.b16 %v612, %v607
    %v683 = vpack.c.b16 %v613, %v608
    %v684 = vpack.c.b16 %v619, %v614
    %v685 = vpack.c.b16 %v620, %v615
    %v686 = vpack.c.b16 %v621, %v616
    %v687 = vpack.c.b16 %v622, %v617
    %v688 = vpack.c.b16 %v623, %v618
    %v689 = vpack.c.b16 %v629, %v624
    %v690 = vpack.c.b16 %v630, %v625
    %v691 = vpack.c.b16 %v631, %v626
    %v692 = vpack.c.b16 %v632, %v627
    %v693 = vpack.c.b16 %v633, %v628
    %v694 = vpack.c.b16 %v639, %v634
    %v695 = vpack.c.b16 %v640, %v635
    %v696 = vpack.c.b16 %v641, %v636
    %v697 = vpack.c.b16 %v642, %v637
    %v698 = vpack.c.b16 %v643, %v638
    %v699 = vpack.c.b16 %v649, %v644
    %v700 = vpack.c.b16 %v650, %v645
    %v701 = vpack.c.b16 %v651, %v646
    %v702 = vpack.c.b16 %v652, %v647
    %v703 = vpack.c.b16 %v653, %v648
    %v704 = vpack.c.b16 %v659, %v654
    %v705 = vpack.c.b16 %v660, %v655
    %v706 = vpack.c.b16 %v661, %v656
    %v707 = vpack.c.b16 %v662, %v657
    %v708 = vpack.c.b16 %v663, %v658
    %v709 = vpack.c.b16 %v669, %v664
    %v710 = vpack.c.b16 %v670, %v665
    %v711 = vpack.c.b16 %v671, %v666
    %v712 = vpack.c.b16 %v672, %v667
    %v713 = vpack.c.b16 %v673, %v668
    %754 = vmatprep.subr.bf16.mxu0 %v675
    %755 = vmatpush1.bf16.msra.mxu0 %v674
    %756 = vmatprep.subr.bf16.mxu0 %v680
    %757 = vmatpush1.bf16.msra.mxu0 %v679
    %758 = vmatprep.subr.bf16.mxu0 %v685
    %759 = vmatpush1.bf16.msra.mxu0 %v684
    %760 = vmatprep.subr.bf16.mxu0 %v690
    %761 = vmatpush1.bf16.msra.mxu0 %v689
    %762 = vmatprep.subr.bf16.mxu0 %v695
    %763 = vmatpush1.bf16.msra.mxu0 %v694
    %764 = vmatprep.subr.bf16.mxu0 %v700
    %765 = vmatpush1.bf16.msra.mxu0 %v699
    %766 = vmatprep.subr.bf16.mxu0 %v705
    %767 = vmatpush1.bf16.msra.mxu0 %v704
    %768 = vmatprep.subr.bf16.mxu0 %v710
    %769 = vmatpush1.bf16.msra.mxu0 %v709
    %770 = vmatprep.subr.bf16.mxu0 0
    %771 = vmatpush1.bf16.msra.mxu0 0
    %772 = vmatprep.subr.bf16.mxu0 0
    %773 = vmatpush1.bf16.msra.mxu0 0
    %774 = vmatprep.subr.bf16.mxu0 0
    %775 = vmatpush1.bf16.msra.mxu0 0
    %776 = vmatprep.subr.bf16.mxu0 0
    %777 = vmatpush1.bf16.msra.mxu0 0
    %778 = vmatprep.subr.bf16.mxu0 0
    %779 = vmatpush1.bf16.msra.mxu0 0
    %780 = vmatprep.subr.bf16.mxu0 0
    %781 = vmatpush1.bf16.msra.mxu0 0
    %782 = vmatprep.subr.bf16.mxu0 0
    %783 = vmatpush1.bf16.msra.mxu0 0
    %784 = vmatprep.subr.bf16.mxu0 0
    %785 = vmatpush1.bf16.msra.mxu0 0
    %786 = vmatprep.mubr.bf16.mxu0 0
    %787 = vmatmul.mubr.bf16.gmra.mrb[0].mxu0 %v495
    %v788 = vpop.f32.mrb[0].mxu0
    %v789 = vadd.f32 0.0, %v788
    %v790 = vpop.f32.mrb[0].mxu0
    %v791 = vpop.f32.mrb[0].mxu0
    %v792 = vpop.f32.mrb[0].mxu0
    %v793 = vadd.f32 0.0, %v792
    %794 = vmatprep.mubr.bf16.mxu0 0
    %795 = vmatmul.mubr.bf16.gmra.mrb[0].mxu0 %v496
    %v796 = vpop.f32.mrb[0].mxu0
    %v797 = vpop.f32.mrb[0].mxu0
    %v798 = vpop.f32.mrb[0].mxu0
    %v799 = vpop.f32.mrb[0].mxu0
    %800 = vmatprep.mubr.bf16.mxu0 0
    %801 = vmatmul.mubr.bf16.gmra.mrb[0].mxu0 %v497
    %v802 = vpop.f32.mrb[0].mxu0
    %v803 = vpop.f32.mrb[0].mxu0
    %v804 = vpop.f32.mrb[0].mxu0
    %v805 = vpop.f32.mrb[0].mxu0
    %806 = vdwg.mxu0
    %807 = vmatprep.subr.bf16.mxu0 %v677
    %808 = vmatpush1.bf16.msra.mxu0 %v676
    %809 = vmatprep.subr.bf16.mxu0 %v682
    %810 = vmatpush1.bf16.msra.mxu0 %v681
    %811 = vmatprep.subr.bf16.mxu0 %v687
    %812 = vmatpush1.bf16.msra.mxu0 %v686
    %813 = vmatprep.subr.bf16.mxu0 %v692
    %814 = vmatpush1.bf16.msra.mxu0 %v691
    %815 = vmatprep.subr.bf16.mxu0 %v697
    %816 = vmatpush1.bf16.msra.mxu0 %v696
    %817 = vmatprep.subr.bf16.mxu0 %v702
    %818 = vmatpush1.bf16.msra.mxu0 %v701
    %819 = vmatprep.subr.bf16.mxu0 %v707
    %820 = vmatpush1.bf16.msra.mxu0 %v706
    %821 = vmatprep.subr.bf16.mxu0 %v712
    %822 = vmatpush1.bf16.msra.mxu0 %v711
    %823 = vmatprep.subr.bf16.mxu0 0
    %824 = vmatpush1.bf16.msra.mxu0 0
    %825 = vmatprep.subr.bf16.mxu0 0
    %826 = vmatpush1.bf16.msra.mxu0 0
    %827 = vmatprep.subr.bf16.mxu0 0
    %828 = vmatpush1.bf16.msra.mxu0 0
    %829 = vmatprep.subr.bf16.mxu0 0
    %830 = vmatpush1.bf16.msra.mxu0 0
    %831 = vmatprep.subr.bf16.mxu0 0
    %832 = vmatpush1.bf16.msra.mxu0 0
    %833 = vmatprep.subr.bf16.mxu0 0
    %834 = vmatpush1.bf16.msra.mxu0 0
    %835 = vmatprep.subr.bf16.mxu0 0
    %836 = vmatpush1.bf16.msra.mxu0 0
    %837 = vmatprep.subr.bf16.mxu0 0
    %838 = vmatpush1.bf16.msra.mxu0 0
    %839 = vmatprep.mubr.bf16.mxu0 0
    %840 = vmatmul.mubr.bf16.gmra.mrb[0].mxu0 %v495
    %v841 = vpop.f32.mrb[0].mxu0
    %v842 = vpop.f32.mrb[0].mxu0
    %v843 = vpop.f32.mrb[0].mxu0
    %v844 = vpop.f32.mrb[0].mxu0
    %845 = vmatprep.mubr.bf16.mxu0 0
    %846 = vmatmul.mubr.bf16.gmra.mrb[0].mxu0 %v496
    %v847 = vpop.f32.mrb[0].mxu0
    %v848 = vadd.f32 0.0, %v847
    %v849 = vpop.f32.mrb[0].mxu0
    %v850 = vpop.f32.mrb[0].mxu0
    %v851 = vpop.f32.mrb[0].mxu0
    %v852 = vadd.f32 0.0, %v851
    %853 = vmatprep.mubr.bf16.mxu0 0
    %854 = vmatmul.mubr.bf16.gmra.mrb[0].mxu0 %v497
    %v855 = vpop.f32.mrb[0].mxu0
    %v856 = vpop.f32.mrb[0].mxu0
    %v857 = vpop.f32.mrb[0].mxu0
    %v858 = vpop.f32.mrb[0].mxu0
    %859 = vdwg.mxu0
    %860 = vmatprep.subr.bf16.mxu0 0
    %861 = vmatpush1.bf16.msra.mxu0 %v678
    %862 = vmatprep.subr.bf16.mxu0 0
    %863 = vmatpush1.bf16.msra.mxu0 %v683
    %864 = vmatprep.subr.bf16.mxu0 0
    %865 = vmatpush1.bf16.msra.mxu0 %v688
    %866 = vmatprep.subr.bf16.mxu0 0
    %867 = vmatpush1.bf16.msra.mxu0 %v693
    %868 = vmatprep.subr.bf16.mxu0 0
    %869 = vmatpush1.bf16.msra.mxu0 %v698
    %870 = vmatprep.subr.bf16.mxu0 0
    %871 = vmatpush1.bf16.msra.mxu0 %v703
    %872 = vmatprep.subr.bf16.mxu0 0
    %873 = vmatpush1.bf16.msra.mxu0 %v708
    %874 = vmatprep.subr.bf16.mxu0 0
    %875 = vmatpush1.bf16.msra.mxu0 %v713
    %876 = vmatprep.subr.bf16.mxu0 0
    %877 = vmatpush1.bf16.msra.mxu0 0
    %878 = vmatprep.subr.bf16.mxu0 0
    %879 = vmatpush1.bf16.msra.mxu0 0
    %880 = vmatprep.subr.bf16.mxu0 0
    %881 = vmatpush1.bf16.msra.mxu0 0
    %882 = vmatprep.subr.bf16.mxu0 0
    %883 = vmatpush1.bf16.msra.mxu0 0
    %884 = vmatprep.subr.bf16.mxu0 0
    %885 = vmatpush1.bf16.msra.mxu0 0
    %886 = vmatprep.subr.bf16.mxu0 0
    %887 = vmatpush1.bf16.msra.mxu0 0
    %888 = vmatprep.subr.bf16.mxu0 0
    %889 = vmatpush1.bf16.msra.mxu0 0
    %890 = vmatprep.subr.bf16.mxu0 0
    %891 = vmatpush1.bf16.msra.mxu0 0
    %892 = vmatprep.mubr.bf16.mxu0 0
    %893 = vmatmul.mubr.bf16.gmra.mrb[0].mxu0 %v495
    %v894 = vpop.f32.mrb[0].mxu0
    %v895 = vpop.f32.mrb[0].mxu0
    %v896 = vpop.f32.mrb[0].mxu0
    %v897 = vpop.f32.mrb[0].mxu0
    %898 = vmatprep.mubr.bf16.mxu0 0
    %899 = vmatmul.mubr.bf16.gmra.mrb[0].mxu0 %v496
    %v900 = vpop.f32.mrb[0].mxu0
    %v901 = vpop.f32.mrb[0].mxu0
    %v902 = vpop.f32.mrb[0].mxu0
    %v903 = vpop.f32.mrb[0].mxu0
    %904 = vmatprep.mubr.bf16.mxu0 0
    %905 = vmatmul.mubr.bf16.gmra.mrb[0].mxu0 %v497
    %v906 = vpop.f32.mrb[0].mxu0
    %v907 = vadd.f32 0.0, %v906
    %v908 = vpop.f32.mrb[0].mxu0
    %v909 = vpop.f32.mrb[0].mxu0
    %v910 = vpop.f32.mrb[0].mxu0
    %911 = vdwg.mxu0
    %v912 = vadd.f32 %v789, %v793
    %v913 = vadd.f32 %v912, %v848
    %v914 = vadd.f32 %v913, %v852
    %v915 = vadd.f32 %v914, %v907
    %916 = vadd.xlane.f32.xlu0 %v915
    %v917 = vpop.xlane.xlu0 %916
    %v918 = vmul.f32 %v917, 0.1
    %v919 = vmul.f32 %v915, %v915
    %920 = vadd.xlane.f32.xlu0 %v919
    %v921 = vpop.xlane.xlu0 %920
    %v922 = vmul.f32 %v921, 0.1
    %v923 = vmul.f32 %v918, %v918
    %v924 = vsub.f32 %v922, %v923
    %v925 = vmax.f32 %v924, 0.0
    %v926 = vld [vmem:[%s6] sm:$0xff]
    %v927 = vadd.f32 %v925, 1e-05
    %v928 = vrsqrt.pop %v927
    %v929 = vmul.f32 %v926, %v928
    %v930 = vmul.f32 %v918, %v929
    %932 = vrot.lane.b32.xlu0 %v930, 1
    %v933 = vpop.permute.xlu0 %932
    %v935 = vsub.f32 %v926, %v933
    %937 = vset.pattern.permute.xlu0 0
    %938 = vperm.xlu0 %937, %v929
    %v939 = vpop.permute.xlu0 %938
    %v941 = vmul.f32 %v915, %v939
    %943 = vset.pattern.permute.xlu0 1
    %944 = vperm.xlu0 %943, %v935
    %v945 = vpop.permute.xlu0 %944
    %v947 = vadd.f32 %v941, %v945
    %v948 = vmax.f32 %v947, 0.0
    %v949 = vld [vmem:[%s7] sm:$0xf]
    %v950 = vld [vmem:[%s7 + $0x4] sm:$0xf]
    %v951 = vld [vmem:[%s7 + $0x8] sm:$0xf]
    %v952 = vld [vmem:[%s7 + $0xc] sm:$0xf]
    %v953 = vld [vmem:[%s7 + $0x10] sm:$0xf]
    %v954 = vpack.c.bf16 %v948, %v948
    %v960 = vunpack.c.l.b16 %v949
    %v961 = vunpack.c.l.b16 %v950
    %v962 = vunpack.c.l.b16 %v951
    %v963 = vunpack.c.l.b16 %v952
    %v964 = vunpack.c.l.b16 %v953
    %v965 = vpack.c.b16 %v961, %v960
    %v966 = vpack.c.b16 %v963, %v962
    %v967 = vpack.c.b16 %v964, %v964
    %v969 = vsel %vm425, %v965, 0
    %v972 = vsel %vm425, %v966, 0
    %v975 = vsel %vm425, %v967, 0
    %v978 = vsel %vm435, %v954, 0
    %980 = vmatprep.subr.bf16.mxu0 0
    %981 = vmatpush1.bf16.msra.mxu0 %v978
    %982 = vmatprep.subr.bf16.mxu0 0
    %983 = vmatpush1.bf16.msra.mxu0 0
    %984 = vmatprep.subr.bf16.mxu0 0
    %985 = vmatpush1.bf16.msra.mxu0 0
    %986 = vmatprep.subr.bf16.mxu0 0
    %987 = vmatpush1.bf16.msra.mxu0 0
    %988 = vmatprep.subr.bf16.mxu0 0
    %989 = vmatpush1.bf16.msra.mxu0 0
    %990 = vmatprep.subr.bf16.mxu0 0
    %991 = vmatpush1.bf16.msra.mxu0 0
    %992 = vmatprep.subr.bf16.mxu0 0
    %993 = vmatpush1.bf16.msra.mxu0 0
    %994 = vmatprep.subr.bf16.mxu0 0
    %995 = vmatpush1.bf16.msra.mxu0 0
    %996 = vmatprep.subr.bf16.mxu0 0
    %997 = vmatpush1.bf16.msra.mxu0 0
    %998 = vmatprep.subr.bf16.mxu0 0
    %999 = vmatpush1.bf16.msra.mxu0 0
    %1000 = vmatprep.subr.bf16.mxu0 0
    %1001 = vmatpush1.bf16.msra.mxu0 0
    %1002 = vmatprep.subr.bf16.mxu0 0
    %1003 = vmatpush1.bf16.msra.mxu0 0
    %1004 = vmatprep.subr.bf16.mxu0 0
    %1005 = vmatpush1.bf16.msra.mxu0 0
    %1006 = vmatprep.subr.bf16.mxu0 0
    %1007 = vmatpush1.bf16.msra.mxu0 0
    %1008 = vmatprep.subr.bf16.mxu0 0
    %1009 = vmatpush1.bf16.msra.mxu0 0
    %1010 = vmatprep.subr.bf16.mxu0 0
    %1011 = vmatpush1.bf16.msra.mxu0 0
    %1012 = vmatprep.mubr.bf16.mxu0 0
    %1013 = vmatmul.mubr.bf16.gmra.mrb[0].mxu0 %v969
    %v1014 = vpop.f32.mrb[0].mxu0
    %v1015 = vadd.f32 0.0, %v1014
    %v1016 = vpop.f32.mrb[0].mxu0
    %v1017 = vpop.f32.mrb[0].mxu0
    %v1018 = vadd.f32 0.0, %v1017
    %v1019 = vpop.f32.mrb[0].mxu0
    %1020 = vmatprep.mubr.bf16.mxu0 0
    %1021 = vmatmul.mubr.bf16.gmra.mrb[0].mxu0 %v972
    %v1022 = vpop.f32.mrb[0].mxu0
    %v1023 = vadd.f32 0.0, %v1022
    %v1024 = vpop.f32.mrb[0].mxu0
    %v1025 = vpop.f32.mrb[0].mxu0
    %v1026 = vadd.f32 0.0, %v1025
    %v1027 = vpop.f32.mrb[0].mxu0
    %1028 = vmatprep.mubr.bf16.mxu0 0
    %1029 = vmatmul.mubr.bf16.gmra.mrb[0].mxu0 %v975
    %v1030 = vpop.f32.mrb[0].mxu0
    %v1031 = vadd.f32 0.0, %v1030
    %v1032 = vpop.f32.mrb[0].mxu0
    %v1033 = vpop.f32.mrb[0].mxu0
    %v1034 = vpop.f32.mrb[0].mxu0
    %1035 = vdwg.mxu0
    %v1036 = vpack.c.bf16 %v1018, %v1015
    %v1037 = vpack.c.bf16 %v1026, %v1023
    %v1038 = vpack.c.bf16 %v1031, %v1031
    %v1039 = vld [vmem:[#allocation5] sm:$0xff]
    %v1040 = vld [vmem:[#allocation5 + $0x8] sm:$0xff]
    %v1041 = vld [vmem:[#allocation5 + $0x10] sm:$0xf]
    %v1042 = vld [vmem:[#allocation5 + $0x14] sm:$0xff]
    %v1043 = vld [vmem:[#allocation5 + $0x1c] sm:$0xff]
    %v1044 = vld [vmem:[#allocation5 + $0x24] sm:$0xf]
    %v1045 = vld [vmem:[#allocation5 + $0x28] sm:$0xff]
    %v1046 = vld [vmem:[#allocation5 + $0x30] sm:$0xff]
    %v1047 = vld [vmem:[#allocation5 + $0x38] sm:$0xf]
    %v1048 = vld [vmem:[#allocation5 + $0x3c] sm:$0xff]
    %v1049 = vld [vmem:[#allocation5 + $0x44] sm:$0xff]
    %v1050 = vld [vmem:[#allocation5 + $0x4c] sm:$0xf]
    %v1051 = vld [vmem:[#allocation5 + $0x50] sm:$0xff]
    %v1052 = vld [vmem:[#allocation5 + $0x58] sm:$0xff]
    %v1053 = vld [vmem:[#allocation5 + $0x60] sm:$0xf]
    %v1054 = vld [vmem:[#allocation5 + $0x64] sm:$0xff]
    %v1055 = vld [vmem:[#allocation5 + $0x6c] sm:$0xff]
    %v1056 = vld [vmem:[#allocation5 + $0x74] sm:$0xf]
    %v1057 = vld [vmem:[#allocation5 + $0x78] sm:$0xff]
    %v1058 = vld [vmem:[#allocation5 + $0x80] sm:$0xff]
    %v1059 = vld [vmem:[#allocation5 + $0x88] sm:$0xf]
    %v1060 = vld [vmem:[#allocation5 + $0x8c] sm:$0xff]
    %v1061 = vld [vmem:[#allocation5 + $0x94] sm:$0xff]
    %v1062 = vld [vmem:[#allocation5 + $0x9c] sm:$0xf]
    %v1063 = vld [vmem:[#allocation5 + $0xa0] sm:$0xff]
    %v1064 = vld [vmem:[#allocation5 + $0xa8] sm:$0xff]
    %v1065 = vld [vmem:[#allocation5 + $0xb0] sm:$0xf]
    %v1066 = vld [vmem:[#allocation5 + $0xb4] sm:$0xff]
    %v1067 = vld [vmem:[#allocation5 + $0xbc] sm:$0xff]
    %v1068 = vld [vmem:[#allocation5 + $0xc4] sm:$0xf]
    %v1069 = vld [vmem:[#allocation5 + $0xc8] sm:$0xff]
    %v1070 = vld [vmem:[#allocation5 + $0xd0] sm:$0xff]
    %v1071 = vld [vmem:[#allocation5 + $0xd8] sm:$0xf]
    %v1072 = vld [vmem:[#allocation5 + $0xdc] sm:$0xff]
    %v1073 = vld [vmem:[#allocation5 + $0xe4] sm:$0xff]
    %v1074 = vld [vmem:[#allocation5 + $0xec] sm:$0xf]
    %v1075 = vld [vmem:[#allocation5 + $0xf0] sm:$0xff]
    %v1076 = vld [vmem:[#allocation5 + $0xf8] sm:$0xff]
    %v1077 = vld [vmem:[#allocation5 + $0x100] sm:$0xf]
    %v1078 = vld [vmem:[#allocation5 + $0x104] sm:$0xff]
    %v1079 = vld [vmem:[#allocation5 + $0x10c] sm:$0xff]
    %v1080 = vld [vmem:[#allocation5 + $0x114] sm:$0xf]
    %v1081 = vld [vmem:[#allocation5 + $0x118] sm:$0xff]
    %v1082 = vld [vmem:[#allocation5 + $0x120] sm:$0xff]
    %v1083 = vld [vmem:[#allocation5 + $0x128] sm:$0xf]
    %v1084 = vld [vmem:[#allocation5 + $0x12c] sm:$0xff]
    %v1085 = vld [vmem:[#allocation5 + $0x134] sm:$0xff]
    %v1086 = vld [vmem:[#allocation5 + $0x13c] sm:$0xf]
    %v1135 = vunpack.c.l.b16 %v1039
    %v1136 = vunpack.c.h.b16 %v1039
    %v1137 = vunpack.c.l.b16 %v1040
    %v1138 = vunpack.c.h.b16 %v1040
    %v1139 = vunpack.c.l.b16 %v1041
    %v1140 = vunpack.c.l.b16 %v1042
    %v1141 = vunpack.c.h.b16 %v1042
    %v1142 = vunpack.c.l.b16 %v1043
    %v1143 = vunpack.c.h.b16 %v1043
    %v1144 = vunpack.c.l.b16 %v1044
    %v1145 = vunpack.c.l.b16 %v1045
    %v1146 = vunpack.c.h.b16 %v1045
    %v1147 = vunpack.c.l.b16 %v1046
    %v1148 = vunpack.c.h.b16 %v1046
    %v1149 = vunpack.c.l.b16 %v1047
    %v1150 = vunpack.c.l.b16 %v1048
    %v1151 = vunpack.c.h.b16 %v1048
    %v1152 = vunpack.c.l.b16 %v1049
    %v1153 = vunpack.c.h.b16 %v1049
    %v1154 = vunpack.c.l.b16 %v1050
    %v1155 = vunpack.c.l.b16 %v1051
    %v1156 = vunpack.c.h.b16 %v1051
    %v1157 = vunpack.c.l.b16 %v1052
    %v1158 = vunpack.c.h.b16 %v1052
    %v1159 = vunpack.c.l.b16 %v1053
    %v1160 = vunpack.c.l.b16 %v1054
    %v1161 = vunpack.c.h.b16 %v1054
    %v1162 = vunpack.c.l.b16 %v1055
    %v1163 = vunpack.c.h.b16 %v1055
    %v1164 = vunpack.c.l.b16 %v1056
    %v1165 = vunpack.c.l.b16 %v1057
    %v1166 = vunpack.c.h.b16 %v1057
    %v1167 = vunpack.c.l.b16 %v1058
    %v1168 = vunpack.c.h.b16 %v1058
    %v1169 = vunpack.c.l.b16 %v1059
    %v1170 = vunpack.c.l.b16 %v1060
    %v1171 = vunpack.c.h.b16 %v1060
    %v1172 = vunpack.c.l.b16 %v1061
    %v1173 = vunpack.c.h.b16 %v1061
    %v1174 = vunpack.c.l.b16 %v1062
    %v1175 = vunpack.c.l.b16 %v1063
    %v1176 = vunpack.c.h.b16 %v1063
    %v1177 = vunpack.c.l.b16 %v1064
    %v1178 = vunpack.c.h.b16 %v1064
    %v1179 = vunpack.c.l.b16 %v1065
    %v1180 = vunpack.c.l.b16 %v1066
    %v1181 = vunpack.c.h.b16 %v1066
    %v1182 = vunpack.c.l.b16 %v1067
    %v1183 = vunpack.c.h.b16 %v1067
    %v1184 = vunpack.c.l.b16 %v1068
    %v1185 = vunpack.c.l.b16 %v1069
    %v1186 = vunpack.c.h.b16 %v1069
    %v1187 = vunpack.c.l.b16 %v1070
    %v1188 = vunpack.c.h.b16 %v1070
    %v1189 = vunpack.c.l.b16 %v1071
    %v1190 = vunpack.c.l.b16 %v1072
    %v1191 = vunpack.c.h.b16 %v1072
    %v1192 = vunpack.c.l.b16 %v1073
    %v1193 = vunpack.c.h.b16 %v1073
    %v1194 = vunpack.c.l.b16 %v1074
    %v1195 = vunpack.c.l.b16 %v1075
    %v1196 = vunpack.c.h.b16 %v1075
    %v1197 = vunpack.c.l.b16 %v1076
    %v1198 = vunpack.c.h.b16 %v1076
    %v1199 = vunpack.c.l.b16 %v1077
    %v1200 = vunpack.c.l.b16 %v1078
    %v1201 = vunpack.c.h.b16 %v1078
    %v1202 = vunpack.c.l.b16 %v1079
    %v1203 = vunpack.c.h.b16 %v1079
    %v1204 = vunpack.c.l.b16 %v1080
    %v1205 = vunpack.c.l.b16 %v1081
    %v1206 = vunpack.c.h.b16 %v1081
    %v1207 = vunpack.c.l.b16 %v1082
    %v1208 = vunpack.c.h.b16 %v1082
    %v1209 = vunpack.c.l.b16 %v1083
    %v1210 = vunpack.c.l.b16 %v1084
    %v1211 = vunpack.c.h.b16 %v1084
    %v1212 = vunpack.c.l.b16 %v1085
    %v1213 = vunpack.c.h.b16 %v1085
    %v1214 = vunpack.c.l.b16 %v1086
    %v1215 = vpack.c.b16 %v1140, %v1135
    %v1216 = vpack.c.b16 %v1141, %v1136
    %v1217 = vpack.c.b16 %v1142, %v1137
    %v1218 = vpack.c.b16 %v1143, %v1138
    %v1219 = vpack.c.b16 %v1144, %v1139
    %v1220 = vpack.c.b16 %v1150, %v1145
    %v1221 = vpack.c.b16 %v1151, %v1146
    %v1222 = vpack.c.b16 %v1152, %v1147
    %v1223 = vpack.c.b16 %v1153, %v1148
    %v1224 = vpack.c.b16 %v1154, %v1149
    %v1225 = vpack.c.b16 %v1160, %v1155
    %v1226 = vpack.c.b16 %v1161, %v1156
    %v1227 = vpack.c.b16 %v1162, %v1157
    %v1228 = vpack.c.b16 %v1163, %v1158
    %v1229 = vpack.c.b16 %v1164, %v1159
    %v1230 = vpack.c.b16 %v1170, %v1165
    %v1231 = vpack.c.b16 %v1171, %v1166
    %v1232 = vpack.c.b16 %v1172, %v1167
    %v1233 = vpack.c.b16 %v1173, %v1168
    %v1234 = vpack.c.b16 %v1174, %v1169
    %v1235 = vpack.c.b16 %v1180, %v1175
    %v1236 = vpack.c.b16 %v1181, %v1176
    %v1237 = vpack.c.b16 %v1182, %v1177
    %v1238 = vpack.c.b16 %v1183, %v1178
    %v1239 = vpack.c.b16 %v1184, %v1179
    %v1240 = vpack.c.b16 %v1190, %v1185
    %v1241 = vpack.c.b16 %v1191, %v1186
    %v1242 = vpack.c.b16 %v1192, %v1187
    %v1243 = vpack.c.b16 %v1193, %v1188
    %v1244 = vpack.c.b16 %v1194, %v1189
    %v1245 = vpack.c.b16 %v1200, %v1195
    %v1246 = vpack.c.b16 %v1201, %v1196
    %v1247 = vpack.c.b16 %v1202, %v1197
    %v1248 = vpack.c.b16 %v1203, %v1198
    %v1249 = vpack.c.b16 %v1204, %v1199
    %v1250 = vpack.c.b16 %v1210, %v1205
    %v1251 = vpack.c.b16 %v1211, %v1206
    %v1252 = vpack.c.b16 %v1212, %v1207
    %v1253 = vpack.c.b16 %v1213, %v1208
    %v1254 = vpack.c.b16 %v1214, %v1209
    %1295 = vmatprep.subr.bf16.mxu0 %v1216
    %1296 = vmatpush1.bf16.msra.mxu0 %v1215
    %1297 = vmatprep.subr.bf16.mxu0 %v1221
    %1298 = vmatpush1.bf16.msra.mxu0 %v1220
    %1299 = vmatprep.subr.bf16.mxu0 %v1226
    %1300 = vmatpush1.bf16.msra.mxu0 %v1225
    %1301 = vmatprep.subr.bf16.mxu0 %v1231
    %1302 = vmatpush1.bf16.msra.mxu0 %v1230
    %1303 = vmatprep.subr.bf16.mxu0 %v1236
    %1304 = vmatpush1.bf16.msra.mxu0 %v1235
    %1305 = vmatprep.subr.bf16.mxu0 %v1241
    %1306 = vmatpush1.bf16.msra.mxu0 %v1240
    %1307 = vmatprep.subr.bf16.mxu0 %v1246
    %1308 = vmatpush1.bf16.msra.mxu0 %v1245
    %1309 = vmatprep.subr.bf16.mxu0 %v1251
    %1310 = vmatpush1.bf16.msra.mxu0 %v1250
    %1311 = vmatprep.subr.bf16.mxu0 0
    %1312 = vmatpush1.bf16.msra.mxu0 0
    %1313 = vmatprep.subr.bf16.mxu0 0
    %1314 = vmatpush1.bf16.msra.mxu0 0
    %1315 = vmatprep.subr.bf16.mxu0 0
    %1316 = vmatpush1.bf16.msra.mxu0 0
    %1317 = vmatprep.subr.bf16.mxu0 0
    %1318 = vmatpush1.bf16.msra.mxu0 0
    %1319 = vmatprep.subr.bf16.mxu0 0
    %1320 = vmatpush1.bf16.msra.mxu0 0
    %1321 = vmatprep.subr.bf16.mxu0 0
    %1322 = vmatpush1.bf16.msra.mxu0 0
    %1323 = vmatprep.subr.bf16.mxu0 0
    %1324 = vmatpush1.bf16.msra.mxu0 0
    %1325 = vmatprep.subr.bf16.mxu0 0
    %1326 = vmatpush1.bf16.msra.mxu0 0
    %1327 = vmatprep.mubr.bf16.mxu0 0
    %1328 = vmatmul.mubr.bf16.gmra.mrb[0].mxu0 %v1036
    %v1329 = vpop.f32.mrb[0].mxu0
    %v1330 = vadd.f32 0.0, %v1329
    %v1331 = vpop.f32.mrb[0].mxu0
    %v1332 = vpop.f32.mrb[0].mxu0
    %v1333 = vpop.f32.mrb[0].mxu0
    %v1334 = vadd.f32 0.0, %v1333
    %1335 = vmatprep.mubr.bf16.mxu0 0
    %1336 = vmatmul.mubr.bf16.gmra.mrb[0].mxu0 %v1037
    %v1337 = vpop.f32.mrb[0].mxu0
    %v1338 = vpop.f32.mrb[0].mxu0
    %v1339 = vpop.f32.mrb[0].mxu0
    %v1340 = vpop.f32.mrb[0].mxu0
    %1341 = vmatprep.mubr.bf16.mxu0 0
    %1342 = vmatmul.mubr.bf16.gmra.mrb[0].mxu0 %v1038
    %v1343 = vpop.f32.mrb[0].mxu0
    %v1344 = vpop.f32.mrb[0].mxu0
    %v1345 = vpop.f32.mrb[0].mxu0
    %v1346 = vpop.f32.mrb[0].mxu0
    %1347 = vdwg.mxu0
    %1348 = vmatprep.subr.bf16.mxu0 %v1218
    %1349 = vmatpush1.bf16.msra.mxu0 %v1217
    %1350 = vmatprep.subr.bf16.mxu0 %v1223
    %1351 = vmatpush1.bf16.msra.mxu0 %v1222
    %1352 = vmatprep.subr.bf16.mxu0 %v1228
    %1353 = vmatpush1.bf16.msra.mxu0 %v1227
    %1354 = vmatprep.subr.bf16.mxu0 %v1233
    %1355 = vmatpush1.bf16.msra.mxu0 %v1232
    %1356 = vmatprep.subr.bf16.mxu0 %v1238
    %1357 = vmatpush1.bf16.msra.mxu0 %v1237
    %1358 = vmatprep.subr.bf16.mxu0 %v1243
    %1359 = vmatpush1.bf16.msra.mxu0 %v1242
    %1360 = vmatprep.subr.bf16.mxu0 %v1248
    %1361 = vmatpush1.bf16.msra.mxu0 %v1247
    %1362 = vmatprep.subr.bf16.mxu0 %v1253
    %1363 = vmatpush1.bf16.msra.mxu0 %v1252
    %1364 = vmatprep.subr.bf16.mxu0 0
    %1365 = vmatpush1.bf16.msra.mxu0 0
    %1366 = vmatprep.subr.bf16.mxu0 0
    %1367 = vmatpush1.bf16.msra.mxu0 0
    %1368 = vmatprep.subr.bf16.mxu0 0
    %1369 = vmatpush1.bf16.msra.mxu0 0
    %1370 = vmatprep.subr.bf16.mxu0 0
    %1371 = vmatpush1.bf16.msra.mxu0 0
    %1372 = vmatprep.subr.bf16.mxu0 0
    %1373 = vmatpush1.bf16.msra.mxu0 0
    %1374 = vmatprep.subr.bf16.mxu0 0
    %1375 = vmatpush1.bf16.msra.mxu0 0
    %1376 = vmatprep.subr.bf16.mxu0 0
    %1377 = vmatpush1.bf16.msra.mxu0 0
    %1378 = vmatprep.subr.bf16.mxu0 0
    %1379 = vmatpush1.bf16.msra.mxu0 0
    %1380 = vmatprep.mubr.bf16.mxu0 0
    %1381 = vmatmul.mubr.bf16.gmra.mrb[0].mxu0 %v1036
    %v1382 = vpop.f32.mrb[0].mxu0
    %v1383 = vpop.f32.mrb[0].mxu0
    %v1384 = vpop.f32.mrb[0].mxu0
    %v1385 = vpop.f32.mrb[0].mxu0
    %1386 = vmatprep.mubr.bf16.mxu0 0
    %1387 = vmatmul.mubr.bf16.gmra.mrb[0].mxu0 %v1037
    %v1388 = vpop.f32.mrb[0].mxu0
    %v1389 = vadd.f32 0.0, %v1388
    %v1390 = vpop.f32.mrb[0].mxu0
    %v1391 = vpop.f32.mrb[0].mxu0
    %v1392 = vpop.f32.mrb[0].mxu0
    %v1393 = vadd.f32 0.0, %v1392
    %1394 = vmatprep.mubr.bf16.mxu0 0
    %1395 = vmatmul.mubr.bf16.gmra.mrb[0].mxu0 %v1038
    %v1396 = vpop.f32.mrb[0].mxu0
    %v1397 = vpop.f32.mrb[0].mxu0
    %v1398 = vpop.f32.mrb[0].mxu0
    %v1399 = vpop.f32.mrb[0].mxu0
    %1400 = vdwg.mxu0
    %1401 = vmatprep.subr.bf16.mxu0 0
    %1402 = vmatpush1.bf16.msra.mxu0 %v1219
    %1403 = vmatprep.subr.bf16.mxu0 0
    %1404 = vmatpush1.bf16.msra.mxu0 %v1224
    %1405 = vmatprep.subr.bf16.mxu0 0
    %1406 = vmatpush1.bf16.msra.mxu0 %v1229
    %1407 = vmatprep.subr.bf16.mxu0 0
    %1408 = vmatpush1.bf16.msra.mxu0 %v1234
    %1409 = vmatprep.subr.bf16.mxu0 0
    %1410 = vmatpush1.bf16.msra.mxu0 %v1239
    %1411 = vmatprep.subr.bf16.mxu0 0
    %1412 = vmatpush1.bf16.msra.mxu0 %v1244
    %1413 = vmatprep.subr.bf16.mxu0 0
    %1414 = vmatpush1.bf16.msra.mxu0 %v1249
    %1415 = vmatprep.subr.bf16.mxu0 0
    %1416 = vmatpush1.bf16.msra.mxu0 %v1254
    %1417 = vmatprep.subr.bf16.mxu0 0
    %1418 = vmatpush1.bf16.msra.mxu0 0
    %1419 = vmatprep.subr.bf16.mxu0 0
    %1420 = vmatpush1.bf16.msra.mxu0 0
    %1421 = vmatprep.subr.bf16.mxu0 0
    %1422 = vmatpush1.bf16.msra.mxu0 0
    %1423 = vmatprep.subr.bf16.mxu0 0
    %1424 = vmatpush1.bf16.msra.mxu0 0
    %1425 = vmatprep.subr.bf16.mxu0 0
    %1426 = vmatpush1.bf16.msra.mxu0 0
    %1427 = vmatprep.subr.bf16.mxu0 0
    %1428 = vmatpush1.bf16.msra.mxu0 0
    %1429 = vmatprep.subr.bf16.mxu0 0
    %1430 = vmatpush1.bf16.msra.mxu0 0
    %1431 = vmatprep.subr.bf16.mxu0 0
    %1432 = vmatpush1.bf16.msra.mxu0 0
    %1433 = vmatprep.mubr.bf16.mxu0 0
    %1434 = vmatmul.mubr.bf16.gmra.mrb[0].mxu0 %v1036
    %v1435 = vpop.f32.mrb[0].mxu0
    %v1436 = vpop.f32.mrb[0].mxu0
    %v1437 = vpop.f32.mrb[0].mxu0
    %v1438 = vpop.f32.mrb[0].mxu0
    %1439 = vmatprep.mubr.bf16.mxu0 0
    %1440 = vmatmul.mubr.bf16.gmra.mrb[0].mxu0 %v1037
    %v1441 = vpop.f32.mrb[0].mxu0
    %v1442 = vpop.f32.mrb[0].mxu0
    %v1443 = vpop.f32.mrb[0].mxu0
    %v1444 = vpop.f32.mrb[0].mxu0
    %1445 = vmatprep.mubr.bf16.mxu0 0
    %1446 = vmatmul.mubr.bf16.gmra.mrb[0].mxu0 %v1038
    %v1447 = vpop.f32.mrb[0].mxu0
    %v1448 = vadd.f32 0.0, %v1447
    %v1449 = vpop.f32.mrb[0].mxu0
    %v1450 = vpop.f32.mrb[0].mxu0
    %v1451 = vpop.f32.mrb[0].mxu0
    %1452 = vdwg.mxu0
    %v1453 = vadd.f32 %v1330, %v1334
    %v1454 = vadd.f32 %v1453, %v1389
    %v1455 = vadd.f32 %v1454, %v1393
    %v1456 = vadd.f32 %v1455, %v1448
    %1457 = vadd.xlane.f32.xlu0 %v1456
    %v1458 = vpop.xlane.xlu0 %1457
    %v1459 = vmul.f32 %v1458, 0.05
    %v1460 = vmul.f32 %v1456, %v1456
    %1461 = vadd.xlane.f32.xlu0 %v1460
    %v1462 = vpop.xlane.xlu0 %1461
    %v1463 = vmul.f32 %v1462, 0.05
    %v1464 = vmul.f32 %v1459, %v1459
    %v1465 = vsub.f32 %v1463, %v1464
    %v1466 = vmax.f32 %v1465, 0.0
    %v1467 = vld [vmem:[%s9] sm:$0xff]
    %v1468 = vadd.f32 %v1466, 1e-05
    %v1469 = vrsqrt.pop %v1468
    %v1470 = vmul.f32 %v1467, %v1469
    %v1471 = vmul.f32 %v1459, %v1470
    %1473 = vrot.lane.b32.xlu0 %v1471, 1
    %v1474 = vpop.permute.xlu0 %1473
    %v1476 = vsub.f32 %v1467, %v1474
    %1478 = vset.pattern.permute.xlu0 0
    %1479 = vperm.xlu0 %1478, %v1470
    %v1480 = vpop.permute.xlu0 %1479
    %v1482 = vmul.f32 %v1456, %v1480
    %1484 = vset.pattern.permute.xlu0 1
    %1485 = vperm.xlu0 %1484, %v1476
    %v1486 = vpop.permute.xlu0 %1485
    %v1488 = vadd.f32 %v1482, %v1486
    %v1489 = vmax.f32 %v1488, 0.0
    %v1490 = vld [vmem:[%s10] sm:$0xf]
    %v1491 = vld [vmem:[%s10 + $0x4] sm:$0xf]
    %v1492 = vld [vmem:[%s10 + $0x8] sm:$0xf]
    %v1493 = vld [vmem:[%s10 + $0xc] sm:$0xf]
    %v1494 = vld [vmem:[%s10 + $0x10] sm:$0xf]
    %v1495 = vpack.c.bf16 %v1489, %v1489
    %v1501 = vunpack.c.l.b16 %v1490
    %v1502 = vunpack.c.l.b16 %v1491
    %v1503 = vunpack.c.l.b16 %v1492
    %v1504 = vunpack.c.l.b16 %v1493
    %v1505 = vunpack.c.l.b16 %v1494
    %v1506 = vpack.c.b16 %v1502, %v1501
    %v1507 = vpack.c.b16 %v1504, %v1503
    %v1508 = vpack.c.b16 %v1505, %v1505
    %v1510 = vsel %vm425, %v1506, 0
    %v1513 = vsel %vm425, %v1507, 0
    %v1516 = vsel %vm425, %v1508, 0
    %v1519 = vsel %vm435, %v1495, 0
    %1521 = vmatprep.subr.bf16.mxu0 0
    %1522 = vmatpush1.bf16.msra.mxu0 %v1519
    %1523 = vmatprep.subr.bf16.mxu0 0
    %1524 = vmatpush1.bf16.msra.mxu0 0
    %1525 = vmatprep.subr.bf16.mxu0 0
    %1526 = vmatpush1.bf16.msra.mxu0 0
    %1527 = vmatprep.subr.bf16.mxu0 0
    %1528 = vmatpush1.bf16.msra.mxu0 0
    %1529 = vmatprep.subr.bf16.mxu0 0
    %1530 = vmatpush1.bf16.msra.mxu0 0
    %1531 = vmatprep.subr.bf16.mxu0 0
    %1532 = vmatpush1.bf16.msra.mxu0 0
    %1533 = vmatprep.subr.bf16.mxu0 0
    %1534 = vmatpush1.bf16.msra.mxu0 0
    %1535 = vmatprep.subr.bf16.mxu0 0
    %1536 = vmatpush1.bf16.msra.mxu0 0
    %1537 = vmatprep.subr.bf16.mxu0 0
    %1538 = vmatpush1.bf16.msra.mxu0 0
    %1539 = vmatprep.subr.bf16.mxu0 0
    %1540 = vmatpush1.bf16.msra.mxu0 0
    %1541 = vmatprep.subr.bf16.mxu0 0
    %1542 = vmatpush1.bf16.msra.mxu0 0
    %1543 = vmatprep.subr.bf16.mxu0 0
    %1544 = vmatpush1.bf16.msra.mxu0 0
    %1545 = vmatprep.subr.bf16.mxu0 0
    %1546 = vmatpush1.bf16.msra.mxu0 0
    %1547 = vmatprep.subr.bf16.mxu0 0
    %1548 = vmatpush1.bf16.msra.mxu0 0
    %1549 = vmatprep.subr.bf16.mxu0 0
    %1550 = vmatpush1.bf16.msra.mxu0 0
    %1551 = vmatprep.subr.bf16.mxu0 0
    %1552 = vmatpush1.bf16.msra.mxu0 0
    %1553 = vmatprep.mubr.bf16.mxu0 0
    %1554 = vmatmul.mubr.bf16.gmra.mrb[0].mxu0 %v1510
    %v1555 = vpop.f32.mrb[0].mxu0
    %v1556 = vadd.f32 0.0, %v1555
    %v1557 = vpop.f32.mrb[0].mxu0
    %v1558 = vpop.f32.mrb[0].mxu0
    %v1559 = vadd.f32 0.0, %v1558
    %v1560 = vpop.f32.mrb[0].mxu0
    %1561 = vmatprep.mubr.bf16.mxu0 0
    %1562 = vmatmul.mubr.bf16.gmra.mrb[0].mxu0 %v1513
    %v1563 = vpop.f32.mrb[0].mxu0
    %v1564 = vadd.f32 0.0, %v1563
    %v1565 = vpop.f32.mrb[0].mxu0
    %v1566 = vpop.f32.mrb[0].mxu0
    %v1567 = vadd.f32 0.0, %v1566
    %v1568 = vpop.f32.mrb[0].mxu0
    %1569 = vmatprep.mubr.bf16.mxu0 0
    %1570 = vmatmul.mubr.bf16.gmra.mrb[0].mxu0 %v1516
    %v1571 = vpop.f32.mrb[0].mxu0
    %v1572 = vadd.f32 0.0, %v1571
    %v1573 = vpop.f32.mrb[0].mxu0
    %v1574 = vpop.f32.mrb[0].mxu0
    %v1575 = vpop.f32.mrb[0].mxu0
    %1576 = vdwg.mxu0
    %v1577 = vpack.c.bf16 %v1559, %v1556
    %v1578 = vpack.c.bf16 %v1567, %v1564
    %v1579 = vpack.c.bf16 %v1572, %v1572
    %v1580 = vld [vmem:[#allocation7] sm:$0xff]
    %v1581 = vld [vmem:[#allocation7 + $0x8] sm:$0xff]
    %v1582 = vld [vmem:[#allocation7 + $0x10] sm:$0xf]
    %v1583 = vld [vmem:[#allocation7 + $0x14] sm:$0xff]
    %v1584 = vld [vmem:[#allocation7 + $0x1c] sm:$0xff]
    %v1585 = vld [vmem:[#allocation7 + $0x24] sm:$0xf]
    %v1586 = vld [vmem:[#allocation7 + $0x28] sm:$0xff]
    %v1587 = vld [vmem:[#allocation7 + $0x30] sm:$0xff]
    %v1588 = vld [vmem:[#allocation7 + $0x38] sm:$0xf]
    %v1589 = vld [vmem:[#allocation7 + $0x3c] sm:$0xff]
    %v1590 = vld [vmem:[#allocation7 + $0x44] sm:$0xff]
    %v1591 = vld [vmem:[#allocation7 + $0x4c] sm:$0xf]
    %v1592 = vld [vmem:[#allocation7 + $0x50] sm:$0xff]
    %v1593 = vld [vmem:[#allocation7 + $0x58] sm:$0xff]
    %v1594 = vld [vmem:[#allocation7 + $0x60] sm:$0xf]
    %v1595 = vld [vmem:[#allocation7 + $0x64] sm:$0xff]
    %v1596 = vld [vmem:[#allocation7 + $0x6c] sm:$0xff]
    %v1597 = vld [vmem:[#allocation7 + $0x74] sm:$0xf]
    %v1598 = vld [vmem:[#allocation7 + $0x78] sm:$0xff]
    %v1599 = vld [vmem:[#allocation7 + $0x80] sm:$0xff]
    %v1600 = vld [vmem:[#allocation7 + $0x88] sm:$0xf]
    %v1601 = vld [vmem:[#allocation7 + $0x8c] sm:$0xff]
    %v1602 = vld [vmem:[#allocation7 + $0x94] sm:$0xff]
    %v1603 = vld [vmem:[#allocation7 + $0x9c] sm:$0xf]
    %v1604 = vld [vmem:[#allocation7 + $0xa0] sm:$0xff]
    %v1605 = vld [vmem:[#allocation7 + $0xa8] sm:$0xff]
    %v1606 = vld [vmem:[#allocation7 + $0xb0] sm:$0xf]
    %v1607 = vld [vmem:[#allocation7 + $0xb4] sm:$0xff]
    %v1608 = vld [vmem:[#allocation7 + $0xbc] sm:$0xff]
    %v1609 = vld [vmem:[#allocation7 + $0xc4] sm:$0xf]
    %v1610 = vld [vmem:[#allocation7 + $0xc8] sm:$0xff]
    %v1611 = vld [vmem:[#allocation7 + $0xd0] sm:$0xff]
    %v1612 = vld [vmem:[#allocation7 + $0xd8] sm:$0xf]
    %v1613 = vld [vmem:[#allocation7 + $0xdc] sm:$0xff]
    %v1614 = vld [vmem:[#allocation7 + $0xe4] sm:$0xff]
    %v1615 = vld [vmem:[#allocation7 + $0xec] sm:$0xf]
    %v1616 = vld [vmem:[#allocation7 + $0xf0] sm:$0xff]
    %v1617 = vld [vmem:[#allocation7 + $0xf8] sm:$0xff]
    %v1618 = vld [vmem:[#allocation7 + $0x100] sm:$0xf]
    %v1619 = vld [vmem:[#allocation7 + $0x104] sm:$0xff]
    %v1620 = vld [vmem:[#allocation7 + $0x10c] sm:$0xff]
    %v1621 = vld [vmem:[#allocation7 + $0x114] sm:$0xf]
    %v1622 = vld [vmem:[#allocation7 + $0x118] sm:$0xff]
    %v1623 = vld [vmem:[#allocation7 + $0x120] sm:$0xff]
    %v1624 = vld [vmem:[#allocation7 + $0x128] sm:$0xf]
    %v1625 = vld [vmem:[#allocation7 + $0x12c] sm:$0xff]
    %v1626 = vld [vmem:[#allocation7 + $0x134] sm:$0xff]
    %v1627 = vld [vmem:[#allocation7 + $0x13c] sm:$0xf]
    %v1676 = vunpack.c.l.b16 %v1580
    %v1677 = vunpack.c.h.b16 %v1580
    %v1678 = vunpack.c.l.b16 %v1581
    %v1679 = vunpack.c.h.b16 %v1581
    %v1680 = vunpack.c.l.b16 %v1582
    %v1681 = vunpack.c.l.b16 %v1583
    %v1682 = vunpack.c.h.b16 %v1583
    %v1683 = vunpack.c.l.b16 %v1584
    %v1684 = vunpack.c.h.b16 %v1584
    %v1685 = vunpack.c.l.b16 %v1585
    %v1686 = vunpack.c.l.b16 %v1586
    %v1687 = vunpack.c.h.b16 %v1586
    %v1688 = vunpack.c.l.b16 %v1587
    %v1689 = vunpack.c.h.b16 %v1587
    %v1690 = vunpack.c.l.b16 %v1588
    %v1691 = vunpack.c.l.b16 %v1589
    %v1692 = vunpack.c.h.b16 %v1589
    %v1693 = vunpack.c.l.b16 %v1590
    %v1694 = vunpack.c.h.b16 %v1590
    %v1695 = vunpack.c.l.b16 %v1591
    %v1696 = vunpack.c.l.b16 %v1592
    %v1697 = vunpack.c.h.b16 %v1592
    %v1698 = vunpack.c.l.b16 %v1593
    %v1699 = vunpack.c.h.b16 %v1593
    %v1700 = vunpack.c.l.b16 %v1594
    %v1701 = vunpack.c.l.b16 %v1595
    %v1702 = vunpack.c.h.b16 %v1595
    %v1703 = vunpack.c.l.b16 %v1596
    %v1704 = vunpack.c.h.b16 %v1596
    %v1705 = vunpack.c.l.b16 %v1597
    %v1706 = vunpack.c.l.b16 %v1598
    %v1707 = vunpack.c.h.b16 %v1598
    %v1708 = vunpack.c.l.b16 %v1599
    %v1709 = vunpack.c.h.b16 %v1599
    %v1710 = vunpack.c.l.b16 %v1600
    %v1711 = vunpack.c.l.b16 %v1601
    %v1712 = vunpack.c.h.b16 %v1601
    %v1713 = vunpack.c.l.b16 %v1602
    %v1714 = vunpack.c.h.b16 %v1602
    %v1715 = vunpack.c.l.b16 %v1603
    %v1716 = vunpack.c.l.b16 %v1604
    %v1717 = vunpack.c.h.b16 %v1604
    %v1718 = vunpack.c.l.b16 %v1605
    %v1719 = vunpack.c.h.b16 %v1605
    %v1720 = vunpack.c.l.b16 %v1606
    %v1721 = vunpack.c.l.b16 %v1607
    %v1722 = vunpack.c.h.b16 %v1607
    %v1723 = vunpack.c.l.b16 %v1608
    %v1724 = vunpack.c.h.b16 %v1608
    %v1725 = vunpack.c.l.b16 %v1609
    %v1726 = vunpack.c.l.b16 %v1610
    %v1727 = vunpack.c.h.b16 %v1610
    %v1728 = vunpack.c.l.b16 %v1611
    %v1729 = vunpack.c.h.b16 %v1611
    %v1730 = vunpack.c.l.b16 %v1612
    %v1731 = vunpack.c.l.b16 %v1613
    %v1732 = vunpack.c.h.b16 %v1613
    %v1733 = vunpack.c.l.b16 %v1614
    %v1734 = vunpack.c.h.b16 %v1614
    %v1735 = vunpack.c.l.b16 %v1615
    %v1736 = vunpack.c.l.b16 %v1616
    %v1737 = vunpack.c.h.b16 %v1616
    %v1738 = vunpack.c.l.b16 %v1617
    %v1739 = vunpack.c.h.b16 %v1617
    %v1740 = vunpack.c.l.b16 %v1618
    %v1741 = vunpack.c.l.b16 %v1619
    %v1742 = vunpack.c.h.b16 %v1619
    %v1743 = vunpack.c.l.b16 %v1620
    %v1744 = vunpack.c.h.b16 %v1620
    %v1745 = vunpack.c.l.b16 %v1621
    %v1746 = vunpack.c.l.b16 %v1622
    %v1747 = vunpack.c.h.b16 %v1622
    %v1748 = vunpack.c.l.b16 %v1623
    %v1749 = vunpack.c.h.b16 %v1623
    %v1750 = vunpack.c.l.b16 %v1624
    %v1751 = vunpack.c.l.b16 %v1625
    %v1752 = vunpack.c.h.b16 %v1625
    %v1753 = vunpack.c.l.b16 %v1626
    %v1754 = vunpack.c.h.b16 %v1626
    %v1755 = vunpack.c.l.b16 %v1627
    %v1756 = vpack.c.b16 %v1681, %v1676
    %v1757 = vpack.c.b16 %v1682, %v1677
    %v1758 = vpack.c.b16 %v1683, %v1678
    %v1759 = vpack.c.b16 %v1684, %v1679
    %v1760 = vpack.c.b16 %v1685, %v1680
    %v1761 = vpack.c.b16 %v1691, %v1686
    %v1762 = vpack.c.b16 %v1692, %v1687
    %v1763 = vpack.c.b16 %v1693, %v1688
    %v1764 = vpack.c.b16 %v1694, %v1689
    %v1765 = vpack.c.b16 %v1695, %v1690
    %v1766 = vpack.c.b16 %v1701, %v1696
    %v1767 = vpack.c.b16 %v1702, %v1697
    %v1768 = vpack.c.b16 %v1703, %v1698
    %v1769 = vpack.c.b16 %v1704, %v1699
    %v1770 = vpack.c.b16 %v1705, %v1700
    %v1771 = vpack.c.b16 %v1711, %v1706
    %v1772 = vpack.c.b16 %v1712, %v1707
    %v1773 = vpack.c.b16 %v1713, %v1708
    %v1774 = vpack.c.b16 %v1714, %v1709
    %v1775 = vpack.c.b16 %v1715, %v1710
    %v1776 = vpack.c.b16 %v1721, %v1716
    %v1777 = vpack.c.b16 %v1722, %v1717
    %v1778 = vpack.c.b16 %v1723, %v1718
    %v1779 = vpack.c.b16 %v1724, %v1719
    %v1780 = vpack.c.b16 %v1725, %v1720
    %v1781 = vpack.c.b16 %v1731, %v1726
    %v1782 = vpack.c.b16 %v1732, %v1727
    %v1783 = vpack.c.b16 %v1733, %v1728
    %v1784 = vpack.c.b16 %v1734, %v1729
    %v1785 = vpack.c.b16 %v1735, %v1730
    %v1786 = vpack.c.b16 %v1741, %v1736
    %v1787 = vpack.c.b16 %v1742, %v1737
    %v1788 = vpack.c.b16 %v1743, %v1738
    %v1789 = vpack.c.b16 %v1744, %v1739
    %v1790 = vpack.c.b16 %v1745, %v1740
    %v1791 = vpack.c.b16 %v1751, %v1746
    %v1792 = vpack.c.b16 %v1752, %v1747
    %v1793 = vpack.c.b16 %v1753, %v1748
    %v1794 = vpack.c.b16 %v1754, %v1749
    %v1795 = vpack.c.b16 %v1755, %v1750
    %1836 = vmatprep.subr.bf16.mxu0 %v1757
    %1837 = vmatpush1.bf16.msra.mxu0 %v1756
    %1838 = vmatprep.subr.bf16.mxu0 %v1762
    %1839 = vmatpush1.bf16.msra.mxu0 %v1761
    %1840 = vmatprep.subr.bf16.mxu0 %v1767
    %1841 = vmatpush1.bf16.msra.mxu0 %v1766
    %1842 = vmatprep.subr.bf16.mxu0 %v1772
    %1843 = vmatpush1.bf16.msra.mxu0 %v1771
    %1844 = vmatprep.subr.bf16.mxu0 %v1777
    %1845 = vmatpush1.bf16.msra.mxu0 %v1776
    %1846 = vmatprep.subr.bf16.mxu0 %v1782
    %1847 = vmatpush1.bf16.msra.mxu0 %v1781
    %1848 = vmatprep.subr.bf16.mxu0 %v1787
    %1849 = vmatpush1.bf16.msra.mxu0 %v1786
    %1850 = vmatprep.subr.bf16.mxu0 %v1792
    %1851 = vmatpush1.bf16.msra.mxu0 %v1791
    %1852 = vmatprep.subr.bf16.mxu0 0
    %1853 = vmatpush1.bf16.msra.mxu0 0
    %1854 = vmatprep.subr.bf16.mxu0 0
    %1855 = vmatpush1.bf16.msra.mxu0 0
    %1856 = vmatprep.subr.bf16.mxu0 0
    %1857 = vmatpush1.bf16.msra.mxu0 0
    %1858 = vmatprep.subr.bf16.mxu0 0
    %1859 = vmatpush1.bf16.msra.mxu0 0
    %1860 = vmatprep.subr.bf16.mxu0 0
    %1861 = vmatpush1.bf16.msra.mxu0 0
    %1862 = vmatprep.subr.bf16.mxu0 0
    %1863 = vmatpush1.bf16.msra.mxu0 0
    %1864 = vmatprep.subr.bf16.mxu0 0
    %1865 = vmatpush1.bf16.msra.mxu0 0
    %1866 = vmatprep.subr.bf16.mxu0 0
    %1867 = vmatpush1.bf16.msra.mxu0 0
    %1868 = vmatprep.mubr.bf16.mxu0 0
    %1869 = vmatmul.mubr.bf16.gmra.mrb[0].mxu0 %v1577
    %v1870 = vpop.f32.mrb[0].mxu0
    %v1871 = vadd.f32 0.0, %v1870
    %v1872 = vpop.f32.mrb[0].mxu0
    %v1873 = vpop.f32.mrb[0].mxu0
    %v1874 = vpop.f32.mrb[0].mxu0
    %v1875 = vadd.f32 0.0, %v1874
    %1876 = vmatprep.mubr.bf16.mxu0 0
    %1877 = vmatmul.mubr.bf16.gmra.mrb[0].mxu0 %v1578
    %v1878 = vpop.f32.mrb[0].mxu0
    %v1879 = vpop.f32.mrb[0].mxu0
    %v1880 = vpop.f32.mrb[0].mxu0
    %v1881 = vpop.f32.mrb[0].mxu0
    %1882 = vmatprep.mubr.bf16.mxu0 0
    %1883 = vmatmul.mubr.bf16.gmra.mrb[0].mxu0 %v1579
    %v1884 = vpop.f32.mrb[0].mxu0
    %v1885 = vpop.f32.mrb[0].mxu0
    %v1886 = vpop.f32.mrb[0].mxu0
    %v1887 = vpop.f32.mrb[0].mxu0
    %1888 = vdwg.mxu0
    %1889 = vmatprep.subr.bf16.mxu0 %v1759
    %1890 = vmatpush1.bf16.msra.mxu0 %v1758
    %1891 = vmatprep.subr.bf16.mxu0 %v1764
    %1892 = vmatpush1.bf16.msra.mxu0 %v1763
    %1893 = vmatprep.subr.bf16.mxu0 %v1769
    %1894 = vmatpush1.bf16.msra.mxu0 %v1768
    %1895 = vmatprep.subr.bf16.mxu0 %v1774
    %1896 = vmatpush1.bf16.msra.mxu0 %v1773
    %1897 = vmatprep.subr.bf16.mxu0 %v1779
    %1898 = vmatpush1.bf16.msra.mxu0 %v1778
    %1899 = vmatprep.subr.bf16.mxu0 %v1784
    %1900 = vmatpush1.bf16.msra.mxu0 %v1783
    %1901 = vmatprep.subr.bf16.mxu0 %v1789
    %1902 = vmatpush1.bf16.msra.mxu0 %v1788
    %1903 = vmatprep.subr.bf16.mxu0 %v1794
    %1904 = vmatpush1.bf16.msra.mxu0 %v1793
    %1905 = vmatprep.subr.bf16.mxu0 0
    %1906 = vmatpush1.bf16.msra.mxu0 0
    %1907 = vmatprep.subr.bf16.mxu0 0
    %1908 = vmatpush1.bf16.msra.mxu0 0
    %1909 = vmatprep.subr.bf16.mxu0 0
    %1910 = vmatpush1.bf16.msra.mxu0 0
    %1911 = vmatprep.subr.bf16.mxu0 0
    %1912 = vmatpush1.bf16.msra.mxu0 0
    %1913 = vmatprep.subr.bf16.mxu0 0
    %1914 = vmatpush1.bf16.msra.mxu0 0
    %1915 = vmatprep.subr.bf16.mxu0 0
    %1916 = vmatpush1.bf16.msra.mxu0 0
    %1917 = vmatprep.subr.bf16.mxu0 0
    %1918 = vmatpush1.bf16.msra.mxu0 0
    %1919 = vmatprep.subr.bf16.mxu0 0
    %1920 = vmatpush1.bf16.msra.mxu0 0
    %1921 = vmatprep.mubr.bf16.mxu0 0
    %1922 = vmatmul.mubr.bf16.gmra.mrb[0].mxu0 %v1577
    %v1923 = vpop.f32.mrb[0].mxu0
    %v1924 = vpop.f32.mrb[0].mxu0
    %v1925 = vpop.f32.mrb[0].mxu0
    %v1926 = vpop.f32.mrb[0].mxu0
    %1927 = vmatprep.mubr.bf16.mxu0 0
    %1928 = vmatmul.mubr.bf16.gmra.mrb[0].mxu0 %v1578
    %v1929 = vpop.f32.mrb[0].mxu0
    %v1930 = vadd.f32 0.0, %v1929
    %v1931 = vpop.f32.mrb[0].mxu0
    %v1932 = vpop.f32.mrb[0].mxu0
    %v1933 = vpop.f32.mrb[0].mxu0
    %v1934 = vadd.f32 0.0, %v1933
    %1935 = vmatprep.mubr.bf16.mxu0 0
    %1936 = vmatmul.mubr.bf16.gmra.mrb[0].mxu0 %v1579
    %v1937 = vpop.f32.mrb[0].mxu0
    %v1938 = vpop.f32.mrb[0].mxu0
    %v1939 = vpop.f32.mrb[0].mxu0
    %v1940 = vpop.f32.mrb[0].mxu0
    %1941 = vdwg.mxu0
    %1942 = vmatprep.subr.bf16.mxu0 0
    %1943 = vmatpush1.bf16.msra.mxu0 %v1760
    %1944 = vmatprep.subr.bf16.mxu0 0
    %1945 = vmatpush1.bf16.msra.mxu0 %v1765
    %1946 = vmatprep.subr.bf16.mxu0 0
    %1947 = vmatpush1.bf16.msra.mxu0 %v1770
    %1948 = vmatprep.subr.bf16.mxu0 0
    %1949 = vmatpush1.bf16.msra.mxu0 %v1775
    %1950 = vmatprep.subr.bf16.mxu0 0
    %1951 = vmatpush1.bf16.msra.mxu0 %v1780
    %1952 = vmatprep.subr.bf16.mxu0 0
    %1953 = vmatpush1.bf16.msra.mxu0 %v1785
    %1954 = vmatprep.subr.bf16.mxu0 0
    %1955 = vmatpush1.bf16.msra.mxu0 %v1790
    %1956 = vmatprep.subr.bf16.mxu0 0
    %1957 = vmatpush1.bf16.msra.mxu0 %v1795
    %1958 = vmatprep.subr.bf16.mxu0 0
    %1959 = vmatpush1.bf16.msra.mxu0 0
    %1960 = vmatprep.subr.bf16.mxu0 0
    %1961 = vmatpush1.bf16.msra.mxu0 0
    %1962 = vmatprep.subr.bf16.mxu0 0
    %1963 = vmatpush1.bf16.msra.mxu0 0
    %1964 = vmatprep.subr.bf16.mxu0 0
    %1965 = vmatpush1.bf16.msra.mxu0 0
    %1966 = vmatprep.subr.bf16.mxu0 0
    %1967 = vmatpush1.bf16.msra.mxu0 0
    %1968 = vmatprep.subr.bf16.mxu0 0
    %1969 = vmatpush1.bf16.msra.mxu0 0
    %1970 = vmatprep.subr.bf16.mxu0 0
    %1971 = vmatpush1.bf16.msra.mxu0 0
    %1972 = vmatprep.subr.bf16.mxu0 0
    %1973 = vmatpush1.bf16.msra.mxu0 0
    %1974 = vmatprep.mubr.bf16.mxu0 0
    %1975 = vmatmul.mubr.bf16.gmra.mrb[0].mxu0 %v1577
    %v1976 = vpop.f32.mrb[0].mxu0
    %v1977 = vpop.f32.mrb[0].mxu0
    %v1978 = vpop.f32.mrb[0].mxu0
    %v1979 = vpop.f32.mrb[0].mxu0
    %1980 = vmatprep.mubr.bf16.mxu0 0
    %1981 = vmatmul.mubr.bf16.gmra.mrb[0].mxu0 %v1578
    %v1982 = vpop.f32.mrb[0].mxu0
    %v1983 = vpop.f32.mrb[0].mxu0
    %v1984 = vpop.f32.mrb[0].mxu0
    %v1985 = vpop.f32.mrb[0].mxu0
    %1986 = vmatprep.mubr.bf16.mxu0 0
    %1987 = vmatmul.mubr.bf16.gmra.mrb[0].mxu0 %v1579
    %v1988 = vpop.f32.mrb[0].mxu0
    %v1989 = vadd.f32 0.0, %v1988
    %v1990 = vpop.f32.mrb[0].mxu0
    %v1991 = vpop.f32.mrb[0].mxu0
    %v1992 = vpop.f32.mrb[0].mxu0
    %1993 = vdwg.mxu0
    %v1994 = vadd.f32 %v1871, %v1875
    %v1995 = vadd.f32 %v1994, %v1930
    %v1996 = vadd.f32 %v1995, %v1934
    %v1997 = vadd.f32 %v1996, %v1989
    %1998 = vadd.xlane.f32.xlu0 %v1997
    %v1999 = vpop.xlane.xlu0 %1998
    %v2000 = vmul.f32 %v1999, 0.027777778
    %v2001 = vmul.f32 %v1997, %v1997
    %2002 = vadd.xlane.f32.xlu0 %v2001
    %v2003 = vpop.xlane.xlu0 %2002
    %v2004 = vmul.f32 %v2003, 0.027777778
    %v2005 = vmul.f32 %v2000, %v2000
    %v2006 = vsub.f32 %v2004, %v2005
    %v2007 = vmax.f32 %v2006, 0.0
    %v2008 = vld [vmem:[%s12] sm:$0xff]
    %v2009 = vadd.f32 %v2007, 1e-05
    %v2010 = vrsqrt.pop %v2009
    %v2011 = vmul.f32 %v2008, %v2010
    %v2012 = vmul.f32 %v2000, %v2011
    %2014 = vrot.lane.b32.xlu0 %v2012, 1
    %v2015 = vpop.permute.xlu0 %2014
    %v2017 = vsub.f32 %v2008, %v2015
    %2019 = vset.pattern.permute.xlu0 0
    %2020 = vperm.xlu0 %2019, %v2011
    %v2021 = vpop.permute.xlu0 %2020
    %v2023 = vmul.f32 %v1997, %v2021
    %2025 = vset.pattern.permute.xlu0 1
    %2026 = vperm.xlu0 %2025, %v2017
    %v2027 = vpop.permute.xlu0 %2026
    %v2029 = vadd.f32 %v2023, %v2027
    %v2030 = vmax.f32 %v2029, 0.0
    %v2031 = vmin.f32 %v2030, 1.0
    %vm2032 = vcmask 286720
    %2033 = vst.msk [vmem:[#allocation8] sm:$0x1] %vm2032, %v2031
    // Predicated region
    $region66: #{tpu_custom_call.1} parent=1 // pred_check
      _
    $region67: #{tpu_custom_call.1} parent=1 // pred_check_branch
      %2035 = sbr.rel (0) target = $region69
    $region68: #{tpu_custom_call.1} parent=1 // pred_region
      %s2037 = ssub.s32 16, 16
      %2038 = vsyncadd [#allocation4], %s2037
      %s2040 = sshll.u32 [#allocation8], 4
      %s2041 = int_to_ptr.vmem [resolvable:$true] %s2040
      %2043 = dma.vmem_to_hbm [thread:$0]  %s2041, 16, %s13, [#allocation4]
    $region69: #{tpu_custom_call.1} parent=1 // pred_fallthru
      _
    // Predicated region
    $region70: #{tpu_custom_call.1} parent=1 // pred_check
      _
    $region71: #{tpu_custom_call.1} parent=1 // pred_check_branch
      %2045 = sbr.rel (0) target = $region73
    $region72: #{tpu_custom_call.1} parent=1 // pred_region
      %2046 = dma.done [#allocation4], 16
    $region73: #{tpu_custom_call.1} parent=1 // pred_fallthru
      _
    %2047 = vsyncpa [#allocation3], 1
    %2048 = vsyncpa [#allocation6], 1
    %2049 = vsyncpa [#allocation4], 1

</llo_original>
